<compile_context>
chip_gen: v7x
topology: tpu7x:2x2x1
jax: 0.10.0
libtpu: 0.0.40
codegen_flags: <defaults>
</compile_context>

<pallas_src>
import functools

import jax
import jax.numpy as jnp
from jax.experimental import pallas as pl
from jax.experimental.pallas import tpu as pltpu

EPS = 1e-5  # torch.nn.InstanceNorm2d default eps (affine=False, biased variance)


def _residual_block_kernel(x_ref, m_ref, w1_ref, w2_ref, o_ref, *, H, W, NB):
    C = x_ref.shape[1]
    HW = H * W
    inv_hw = 1.0 / HW

    # Lane offset for each (kh, kw) tap, matching the (9, C_out, C_in) weight layout
    # prepared in the wrapper (tap index k = kh*3 + kw).
    tap_offsets = [(kh - 1) * W + (kw - 1) for kh in range(3) for kw in range(3)]

    # Per-tap (C, C) bf16 weight matrices, read once per grid step.
    w1_taps = [w1_ref[k] for k in range(9)]
    w2_taps = [w2_ref[k] for k in range(9)]

    def conv3x3(a, w_taps):
        # a: (C, HW) f32 lane-dense activation.
        # Zero "same" padding is realized by circular roll (XLU) + 0/1 border masks.
        # Nine accumulated K=C matmuls; bf16 MXU operands, f32 accumulation.
        acc = None
        for k, offset in enumerate(tap_offsets):
            if offset == 0:
                tap = a  # center tap: no shift, mask all ones
            else:
                shifted = pltpu.roll(a, (-offset) % HW, 1)
                tap = shifted * m_ref[k:k + 1, :]          # (1, HW) f32 bcast over C
            term = jnp.dot(w_taps[k], tap.astype(jnp.bfloat16),
                           preferred_element_type=jnp.float32)
            acc = term if acc is None else acc + term
        return acc

    def instance_norm(y):
        # Two-pass stats (biased variance, matches InstanceNorm2d).
        mean = jnp.sum(y, axis=1, keepdims=True) * inv_hw
        centered = y - mean
        var = jnp.sum(centered * centered, axis=1, keepdims=True) * inv_hw
        return centered * jax.lax.rsqrt(var + EPS)

    for b in range(NB):
        # conv1 -> InstanceNorm -> ReLU
        h = jnp.maximum(instance_norm(conv3x3(x_ref[b], w1_taps)), 0.0)
        # conv2 -> InstanceNorm -> residual add (residual re-read from the ref).
        out = instance_norm(conv3x3(h, w2_taps))
        o_ref[b] = (out + x_ref[b]).astype(o_ref.dtype)


def _pick_batch_block(N, C, HW):
    """Images per grid step: amortize per-step overhead, but keep >= 2 parallel grid
    steps when N allows (v7x megacore) and a modest double-buffered footprint."""
    budget = 8 << 20  # bytes for double-buffered f32 x + out per step
    nb = 1
    for cand in range(1, N + 1):
        if N % cand:
            continue
        if 4 * cand * C * HW * 4 > budget:
            break
        if N // cand >= 2 or N == 1:
            nb = cand
    return nb


def residual_block(x, w1, b1, w2, b2, *, nb=None):
    """x: (N, C, H, W); w*: (C, C, 3, 3); b*: (C,).

    b1/b2 are accepted for API parity but unused: with InstanceNorm2d(affine=False)
    directly after each conv, a per-channel bias cancels exactly against the mean
    subtraction (exact algebraic no-op).
    """
    del b1, b2
    N, C, H, W = x.shape
    HW = H * W
    if nb is None:
        nb = _pick_batch_block(N, C, HW)
    assert N % nb == 0
    steps = N // nb

    # Lane-dense layout (free wrapper-side reshape); activations stay f32.
    xf = x.reshape(N, C, HW).astype(jnp.float32)

    # Per-tap weight matrices (9, C_out, C_in), pre-cast to bf16 for the MXU.
    def pack(w):
        return jnp.transpose(w, (2, 3, 0, 1)).reshape(9, C, C).astype(jnp.bfloat16)

    w1r = pack(w1)
    w2r = pack(w2)

    # 0/1 border masks for the 9 taps (tiny, constant across the grid). They also
    # zero cross-image wraps if taps are ever folded across a batched lane axis.
    ii = jnp.arange(HW, dtype=jnp.int32)
    col = ii % W
    row = ii // W
    mask_rows = []
    for kh in range(3):
        for kw in range(3):
            dy, dx = kh - 1, kw - 1
            ok = ((col + dx >= 0) & (col + dx < W) &
                  (row + dy >= 0) & (row + dy < H))
            mask_rows.append(ok.astype(jnp.float32))
    masks = jnp.stack(mask_rows, axis=0)  # (9, H*W)

    # VMEM budget: double-buffered f32 x/out + bf16 weights + masks + slack,
    # clamped to v7x's 64 MiB physical ceiling.
    est = (4 * nb * C * HW * 4) + (2 * 2 * 9 * C * C * 2) + (2 * 9 * HW * 4) + (4 << 20)
    vmem_limit = int(min(64 << 20, max(32 << 20, est)))

    out = pl.pallas_call(
        functools.partial(_residual_block_kernel, H=H, W=W, NB=nb),
        out_shape=jax.ShapeDtypeStruct((N, C, HW), jnp.float32),
        grid_spec=pltpu.PrefetchScalarGridSpec(
            num_scalar_prefetch=0,
            grid=(steps,),
            in_specs=[
                pl.BlockSpec((nb, C, HW), lambda n: (n, 0, 0)),   # x (lane-dense)
                pl.BlockSpec((9, HW), lambda n: (0, 0)),          # border masks
                pl.BlockSpec((9, C, C), lambda n: (0, 0, 0)),     # conv1 per-tap weights
                pl.BlockSpec((9, C, C), lambda n: (0, 0, 0)),     # conv2 per-tap weights
            ],
            out_specs=pl.BlockSpec((nb, C, HW), lambda n: (n, 0, 0)),
        ),
        compiler_params=pltpu.CompilerParams(
            dimension_semantics=("parallel",),
            vmem_limit_bytes=vmem_limit,
        ),
        cost_estimate=pl.CostEstimate(
            flops=36 * N * C * C * HW,
            bytes_accessed=8 * N * C * HW + 2 * (9 * C * C * 2) + 9 * HW * 4,
            transcendentals=2 * N * C,
        ),
    )(xf, masks, w1r, w2r)
    return out.reshape(N, C, H, W)


def _reference(x, w1, b1, w2, b2):
    """Pure-JAX f32 reference matching the PyTorch forward (includes conv biases)."""
    def conv(y, w, b):
        out = jax.lax.conv_general_dilated(
            y, w, window_strides=(1, 1), padding=((1, 1), (1, 1)),
            dimension_numbers=("NCHW", "OIHW", "NCHW"))
        return out + b[None, :, None, None]

    def inorm(y):
        m = jnp.mean(y, axis=(2, 3), keepdims=True)
        v = jnp.mean((y - m) ** 2, axis=(2, 3), keepdims=True)
        return (y - m) * jax.lax.rsqrt(v + EPS)

    h = jnp.maximum(inorm(conv(x, w1, b1)), 0.0)
    return inorm(conv(h, w2, b2)) + x


if __name__ == "__main__":
    N, C, H, W = 2, 4, 16, 16
    key = jax.random.PRNGKey(0)
    kx, kw1, kb1, kw2, kb2 = jax.random.split(key, 5)

    x = jax.random.normal(kx, (N, C, H, W), dtype=jnp.float32)

    # Deterministic parameter init (shapes per nn.Conv2d(channels, channels, 3)).
    fan_in = C * 3 * 3
    bound = 1.0 / (fan_in ** 0.5)
    w1 = jax.random.uniform(kw1, (C, C, 3, 3), jnp.float32, -bound, bound)
    b1 = jax.random.uniform(kb1, (C,), jnp.float32, -bound, bound)
    w2 = jax.random.uniform(kw2, (C, C, 3, 3), jnp.float32, -bound, bound)
    b2 = jax.random.uniform(kb2, (C,), jnp.float32, -bound, bound)

    out = jax.block_until_ready(residual_block(x, w1, b1, w2, b2))

    ref = _reference(x, w1, b1, w2, b2)
    assert out.shape == (N, C, H, W)
    # bf16 MXU operands -> relaxed tolerance vs the f32 reference.
    assert jnp.allclose(out, ref, rtol=5e-2, atol=5e-2), "mismatch vs JAX reference"

    print("KERNEL_OK")
</pallas_src>

<mosaic_0001>
module attributes {stable_mosaic.version = 11 : i64} {
  func.func @_residual_block_kernel(%arg0: i32, %arg1: memref<1x4x256xf32, #tpu.memory_space<vmem>>, %arg2: memref<9x256xf32, #tpu.memory_space<vmem>>, %arg3: memref<9x4x4xbf16, #tpu.memory_space<vmem>>, %arg4: memref<9x4x4xbf16, #tpu.memory_space<vmem>>, %arg5: memref<1x4x256xf32, #tpu.memory_space<vmem>>) attributes {dimension_semantics = [#tpu.dimension_semantics<parallel>], iteration_bounds = array<i64: 2>, scalar_prefetch = 0 : i64, scratch_operands = 0 : i64, tpu.core_type = #tpu.core_type<tc>, window_params = [{transform_indices = @transform_0, window_bounds = array<i64: 1, 4, 256>}, {pipeline_mode = #tpu.pipeline_mode<synchronous>, transform_indices = @transform_1, window_bounds = array<i64: 9, 256>}, {pipeline_mode = #tpu.pipeline_mode<synchronous>, transform_indices = @transform_2, window_bounds = array<i64: 9, 4, 4>}, {pipeline_mode = #tpu.pipeline_mode<synchronous>, transform_indices = @transform_3, window_bounds = array<i64: 9, 4, 4>}, {transform_indices = @transform_4, window_bounds = array<i64: 1, 4, 256>}]} {
    %c0 = arith.constant 0 : index
    %c0_0 = arith.constant 0 : index
    %c0_1 = arith.constant 0 : index
    %0 = vector.load %arg3[%c0, %c0_0, %c0_1] : memref<9x4x4xbf16, #tpu.memory_space<vmem>>, vector<1x4x4xbf16>
    %1 = vector.shape_cast %0 : vector<1x4x4xbf16> to vector<4x4xbf16>
    %c1 = arith.constant 1 : index
    %c0_2 = arith.constant 0 : index
    %c0_3 = arith.constant 0 : index
    %2 = vector.load %arg3[%c1, %c0_2, %c0_3] : memref<9x4x4xbf16, #tpu.memory_space<vmem>>, vector<1x4x4xbf16>
    %3 = vector.shape_cast %2 : vector<1x4x4xbf16> to vector<4x4xbf16>
    %c2 = arith.constant 2 : index
    %c0_4 = arith.constant 0 : index
    %c0_5 = arith.constant 0 : index
    %4 = vector.load %arg3[%c2, %c0_4, %c0_5] : memref<9x4x4xbf16, #tpu.memory_space<vmem>>, vector<1x4x4xbf16>
    %5 = vector.shape_cast %4 : vector<1x4x4xbf16> to vector<4x4xbf16>
    %c3 = arith.constant 3 : index
    %c0_6 = arith.constant 0 : index
    %c0_7 = arith.constant 0 : index
    %6 = vector.load %arg3[%c3, %c0_6, %c0_7] : memref<9x4x4xbf16, #tpu.memory_space<vmem>>, vector<1x4x4xbf16>
    %7 = vector.shape_cast %6 : vector<1x4x4xbf16> to vector<4x4xbf16>
    %c4 = arith.constant 4 : index
    %c0_8 = arith.constant 0 : index
    %c0_9 = arith.constant 0 : index
    %8 = vector.load %arg3[%c4, %c0_8, %c0_9] : memref<9x4x4xbf16, #tpu.memory_space<vmem>>, vector<1x4x4xbf16>
    %9 = vector.shape_cast %8 : vector<1x4x4xbf16> to vector<4x4xbf16>
    %c5 = arith.constant 5 : index
    %c0_10 = arith.constant 0 : index
    %c0_11 = arith.constant 0 : index
    %10 = vector.load %arg3[%c5, %c0_10, %c0_11] : memref<9x4x4xbf16, #tpu.memory_space<vmem>>, vector<1x4x4xbf16>
    %11 = vector.shape_cast %10 : vector<1x4x4xbf16> to vector<4x4xbf16>
    %c6 = arith.constant 6 : index
    %c0_12 = arith.constant 0 : index
    %c0_13 = arith.constant 0 : index
    %12 = vector.load %arg3[%c6, %c0_12, %c0_13] : memref<9x4x4xbf16, #tpu.memory_space<vmem>>, vector<1x4x4xbf16>
    %13 = vector.shape_cast %12 : vector<1x4x4xbf16> to vector<4x4xbf16>
    %c7 = arith.constant 7 : index
    %c0_14 = arith.constant 0 : index
    %c0_15 = arith.constant 0 : index
    %14 = vector.load %arg3[%c7, %c0_14, %c0_15] : memref<9x4x4xbf16, #tpu.memory_space<vmem>>, vector<1x4x4xbf16>
    %15 = vector.shape_cast %14 : vector<1x4x4xbf16> to vector<4x4xbf16>
    %c8 = arith.constant 8 : index
    %c0_16 = arith.constant 0 : index
    %c0_17 = arith.constant 0 : index
    %16 = vector.load %arg3[%c8, %c0_16, %c0_17] : memref<9x4x4xbf16, #tpu.memory_space<vmem>>, vector<1x4x4xbf16>
    %17 = vector.shape_cast %16 : vector<1x4x4xbf16> to vector<4x4xbf16>
    %c0_18 = arith.constant 0 : index
    %c0_19 = arith.constant 0 : index
    %c0_20 = arith.constant 0 : index
    %18 = vector.load %arg4[%c0_18, %c0_19, %c0_20] : memref<9x4x4xbf16, #tpu.memory_space<vmem>>, vector<1x4x4xbf16>
    %19 = vector.shape_cast %18 : vector<1x4x4xbf16> to vector<4x4xbf16>
    %c1_21 = arith.constant 1 : index
    %c0_22 = arith.constant 0 : index
    %c0_23 = arith.constant 0 : index
    %20 = vector.load %arg4[%c1_21, %c0_22, %c0_23] : memref<9x4x4xbf16, #tpu.memory_space<vmem>>, vector<1x4x4xbf16>
    %21 = vector.shape_cast %20 : vector<1x4x4xbf16> to vector<4x4xbf16>
    %c2_24 = arith.constant 2 : index
    %c0_25 = arith.constant 0 : index
    %c0_26 = arith.constant 0 : index
    %22 = vector.load %arg4[%c2_24, %c0_25, %c0_26] : memref<9x4x4xbf16, #tpu.memory_space<vmem>>, vector<1x4x4xbf16>
    %23 = vector.shape_cast %22 : vector<1x4x4xbf16> to vector<4x4xbf16>
    %c3_27 = arith.constant 3 : index
    %c0_28 = arith.constant 0 : index
    %c0_29 = arith.constant 0 : index
    %24 = vector.load %arg4[%c3_27, %c0_28, %c0_29] : memref<9x4x4xbf16, #tpu.memory_space<vmem>>, vector<1x4x4xbf16>
    %25 = vector.shape_cast %24 : vector<1x4x4xbf16> to vector<4x4xbf16>
    %c4_30 = arith.constant 4 : index
    %c0_31 = arith.constant 0 : index
    %c0_32 = arith.constant 0 : index
    %26 = vector.load %arg4[%c4_30, %c0_31, %c0_32] : memref<9x4x4xbf16, #tpu.memory_space<vmem>>, vector<1x4x4xbf16>
    %27 = vector.shape_cast %26 : vector<1x4x4xbf16> to vector<4x4xbf16>
    %c5_33 = arith.constant 5 : index
    %c0_34 = arith.constant 0 : index
    %c0_35 = arith.constant 0 : index
    %28 = vector.load %arg4[%c5_33, %c0_34, %c0_35] : memref<9x4x4xbf16, #tpu.memory_space<vmem>>, vector<1x4x4xbf16>
    %29 = vector.shape_cast %28 : vector<1x4x4xbf16> to vector<4x4xbf16>
    %c6_36 = arith.constant 6 : index
    %c0_37 = arith.constant 0 : index
    %c0_38 = arith.constant 0 : index
    %30 = vector.load %arg4[%c6_36, %c0_37, %c0_38] : memref<9x4x4xbf16, #tpu.memory_space<vmem>>, vector<1x4x4xbf16>
    %31 = vector.shape_cast %30 : vector<1x4x4xbf16> to vector<4x4xbf16>
    %c7_39 = arith.constant 7 : index
    %c0_40 = arith.constant 0 : index
    %c0_41 = arith.constant 0 : index
    %32 = vector.load %arg4[%c7_39, %c0_40, %c0_41] : memref<9x4x4xbf16, #tpu.memory_space<vmem>>, vector<1x4x4xbf16>
    %33 = vector.shape_cast %32 : vector<1x4x4xbf16> to vector<4x4xbf16>
    %c8_42 = arith.constant 8 : index
    %c0_43 = arith.constant 0 : index
    %c0_44 = arith.constant 0 : index
    %34 = vector.load %arg4[%c8_42, %c0_43, %c0_44] : memref<9x4x4xbf16, #tpu.memory_space<vmem>>, vector<1x4x4xbf16>
    %35 = vector.shape_cast %34 : vector<1x4x4xbf16> to vector<4x4xbf16>
    %c0_45 = arith.constant 0 : index
    %c0_46 = arith.constant 0 : index
    %c0_47 = arith.constant 0 : index
    %36 = vector.load %arg1[%c0_45, %c0_46, %c0_47] : memref<1x4x256xf32, #tpu.memory_space<vmem>>, vector<1x4x256xf32>
    %37 = vector.shape_cast %36 : vector<1x4x256xf32> to vector<4x256xf32>
    %c17_i32 = arith.constant 17 : i32
    %38 = tpu.dynamic_rotate %37 by %c17_i32 dim 1 : vector<4x256xf32>, i32 -> vector<4x256xf32>
    %c0_48 = arith.constant 0 : index
    %c0_49 = arith.constant 0 : index
    %39 = vector.load %arg2[%c0_48, %c0_49] : memref<9x256xf32, #tpu.memory_space<vmem>>, vector<1x256xf32>
    %40 = vector.broadcast %39 : vector<1x256xf32> to vector<4x256xf32>
    %41 = arith.mulf %38, %40 : vector<4x256xf32>
    %42 = arith.truncf %41 : vector<4x256xf32> to vector<4x256xbf16>
    %cst = arith.constant dense<0.000000e+00> : vector<4x256xf32>
    %43 = tpu.matmul %1, %42, %cst {dimension_numbers = #tpu.dot_dimension_numbers<[1], [0], [0], [1], [0, 0, 1, 1], [], []>} : vector<4x4xbf16>, vector<4x256xbf16>, vector<4x256xf32> -> vector<4x256xf32>
    %c16_i32 = arith.constant 16 : i32
    %44 = tpu.dynamic_rotate %37 by %c16_i32 dim 1 : vector<4x256xf32>, i32 -> vector<4x256xf32>
    %c1_50 = arith.constant 1 : index
    %c0_51 = arith.constant 0 : index
    %45 = vector.load %arg2[%c1_50, %c0_51] : memref<9x256xf32, #tpu.memory_space<vmem>>, vector<1x256xf32>
    %46 = vector.broadcast %45 : vector<1x256xf32> to vector<4x256xf32>
    %47 = arith.mulf %44, %46 : vector<4x256xf32>
    %48 = arith.truncf %47 : vector<4x256xf32> to vector<4x256xbf16>
    %cst_52 = arith.constant dense<0.000000e+00> : vector<4x256xf32>
    %49 = tpu.matmul %3, %48, %cst_52 {dimension_numbers = #tpu.dot_dimension_numbers<[1], [0], [0], [1], [0, 0, 1, 1], [], []>} : vector<4x4xbf16>, vector<4x256xbf16>, vector<4x256xf32> -> vector<4x256xf32>
    %50 = arith.addf %43, %49 : vector<4x256xf32>
    %c15_i32 = arith.constant 15 : i32
    %51 = tpu.dynamic_rotate %37 by %c15_i32 dim 1 : vector<4x256xf32>, i32 -> vector<4x256xf32>
    %c2_53 = arith.constant 2 : index
    %c0_54 = arith.constant 0 : index
    %52 = vector.load %arg2[%c2_53, %c0_54] : memref<9x256xf32, #tpu.memory_space<vmem>>, vector<1x256xf32>
    %53 = vector.broadcast %52 : vector<1x256xf32> to vector<4x256xf32>
    %54 = arith.mulf %51, %53 : vector<4x256xf32>
    %55 = arith.truncf %54 : vector<4x256xf32> to vector<4x256xbf16>
    %cst_55 = arith.constant dense<0.000000e+00> : vector<4x256xf32>
    %56 = tpu.matmul %5, %55, %cst_55 {dimension_numbers = #tpu.dot_dimension_numbers<[1], [0], [0], [1], [0, 0, 1, 1], [], []>} : vector<4x4xbf16>, vector<4x256xbf16>, vector<4x256xf32> -> vector<4x256xf32>
    %57 = arith.addf %50, %56 : vector<4x256xf32>
    %c1_i32 = arith.constant 1 : i32
    %58 = tpu.dynamic_rotate %37 by %c1_i32 dim 1 : vector<4x256xf32>, i32 -> vector<4x256xf32>
    %c3_56 = arith.constant 3 : index
    %c0_57 = arith.constant 0 : index
    %59 = vector.load %arg2[%c3_56, %c0_57] : memref<9x256xf32, #tpu.memory_space<vmem>>, vector<1x256xf32>
    %60 = vector.broadcast %59 : vector<1x256xf32> to vector<4x256xf32>
    %61 = arith.mulf %58, %60 : vector<4x256xf32>
    %62 = arith.truncf %61 : vector<4x256xf32> to vector<4x256xbf16>
    %cst_58 = arith.constant dense<0.000000e+00> : vector<4x256xf32>
    %63 = tpu.matmul %7, %62, %cst_58 {dimension_numbers = #tpu.dot_dimension_numbers<[1], [0], [0], [1], [0, 0, 1, 1], [], []>} : vector<4x4xbf16>, vector<4x256xbf16>, vector<4x256xf32> -> vector<4x256xf32>
    %64 = arith.addf %57, %63 : vector<4x256xf32>
    %65 = arith.truncf %37 : vector<4x256xf32> to vector<4x256xbf16>
    %cst_59 = arith.constant dense<0.000000e+00> : vector<4x256xf32>
    %66 = tpu.matmul %9, %65, %cst_59 {dimension_numbers = #tpu.dot_dimension_numbers<[1], [0], [0], [1], [0, 0, 1, 1], [], []>} : vector<4x4xbf16>, vector<4x256xbf16>, vector<4x256xf32> -> vector<4x256xf32>
    %67 = arith.addf %64, %66 : vector<4x256xf32>
    %c255_i32 = arith.constant 255 : i32
    %68 = tpu.dynamic_rotate %37 by %c255_i32 dim 1 : vector<4x256xf32>, i32 -> vector<4x256xf32>
    %c5_60 = arith.constant 5 : index
    %c0_61 = arith.constant 0 : index
    %69 = vector.load %arg2[%c5_60, %c0_61] : memref<9x256xf32, #tpu.memory_space<vmem>>, vector<1x256xf32>
    %70 = vector.broadcast %69 : vector<1x256xf32> to vector<4x256xf32>
    %71 = arith.mulf %68, %70 : vector<4x256xf32>
    %72 = arith.truncf %71 : vector<4x256xf32> to vector<4x256xbf16>
    %cst_62 = arith.constant dense<0.000000e+00> : vector<4x256xf32>
    %73 = tpu.matmul %11, %72, %cst_62 {dimension_numbers = #tpu.dot_dimension_numbers<[1], [0], [0], [1], [0, 0, 1, 1], [], []>} : vector<4x4xbf16>, vector<4x256xbf16>, vector<4x256xf32> -> vector<4x256xf32>
    %74 = arith.addf %67, %73 : vector<4x256xf32>
    %c241_i32 = arith.constant 241 : i32
    %75 = tpu.dynamic_rotate %37 by %c241_i32 dim 1 : vector<4x256xf32>, i32 -> vector<4x256xf32>
    %c6_63 = arith.constant 6 : index
    %c0_64 = arith.constant 0 : index
    %76 = vector.load %arg2[%c6_63, %c0_64] : memref<9x256xf32, #tpu.memory_space<vmem>>, vector<1x256xf32>
    %77 = vector.broadcast %76 : vector<1x256xf32> to vector<4x256xf32>
    %78 = arith.mulf %75, %77 : vector<4x256xf32>
    %79 = arith.truncf %78 : vector<4x256xf32> to vector<4x256xbf16>
    %cst_65 = arith.constant dense<0.000000e+00> : vector<4x256xf32>
    %80 = tpu.matmul %13, %79, %cst_65 {dimension_numbers = #tpu.dot_dimension_numbers<[1], [0], [0], [1], [0, 0, 1, 1], [], []>} : vector<4x4xbf16>, vector<4x256xbf16>, vector<4x256xf32> -> vector<4x256xf32>
    %81 = arith.addf %74, %80 : vector<4x256xf32>
    %c240_i32 = arith.constant 240 : i32
    %82 = tpu.dynamic_rotate %37 by %c240_i32 dim 1 : vector<4x256xf32>, i32 -> vector<4x256xf32>
    %c7_66 = arith.constant 7 : index
    %c0_67 = arith.constant 0 : index
    %83 = vector.load %arg2[%c7_66, %c0_67] : memref<9x256xf32, #tpu.memory_space<vmem>>, vector<1x256xf32>
    %84 = vector.broadcast %83 : vector<1x256xf32> to vector<4x256xf32>
    %85 = arith.mulf %82, %84 : vector<4x256xf32>
    %86 = arith.truncf %85 : vector<4x256xf32> to vector<4x256xbf16>
    %cst_68 = arith.constant dense<0.000000e+00> : vector<4x256xf32>
    %87 = tpu.matmul %15, %86, %cst_68 {dimension_numbers = #tpu.dot_dimension_numbers<[1], [0], [0], [1], [0, 0, 1, 1], [], []>} : vector<4x4xbf16>, vector<4x256xbf16>, vector<4x256xf32> -> vector<4x256xf32>
    %88 = arith.addf %81, %87 : vector<4x256xf32>
    %c239_i32 = arith.constant 239 : i32
    %89 = tpu.dynamic_rotate %37 by %c239_i32 dim 1 : vector<4x256xf32>, i32 -> vector<4x256xf32>
    %c8_69 = arith.constant 8 : index
    %c0_70 = arith.constant 0 : index
    %90 = vector.load %arg2[%c8_69, %c0_70] : memref<9x256xf32, #tpu.memory_space<vmem>>, vector<1x256xf32>
    %91 = vector.broadcast %90 : vector<1x256xf32> to vector<4x256xf32>
    %92 = arith.mulf %89, %91 : vector<4x256xf32>
    %93 = arith.truncf %92 : vector<4x256xf32> to vector<4x256xbf16>
    %cst_71 = arith.constant dense<0.000000e+00> : vector<4x256xf32>
    %94 = tpu.matmul %17, %93, %cst_71 {dimension_numbers = #tpu.dot_dimension_numbers<[1], [0], [0], [1], [0, 0, 1, 1], [], []>} : vector<4x4xbf16>, vector<4x256xbf16>, vector<4x256xf32> -> vector<4x256xf32>
    %95 = arith.addf %88, %94 : vector<4x256xf32>
    %cst_72 = arith.constant dense<0.000000e+00> : vector<4xf32>
    %96 = vector.multi_reduction <add>, %95, %cst_72 [1] : vector<4x256xf32> to vector<4xf32>
    %97 = vector.shape_cast %96 : vector<4xf32> to vector<4x1xf32>
    %cst_73 = arith.constant 3.906250e-03 : f32
    %98 = vector.broadcast %cst_73 : f32 to vector<4x1xf32>
    %99 = arith.mulf %97, %98 : vector<4x1xf32>
    %100 = vector.broadcast %99 : vector<4x1xf32> to vector<4x256xf32>
    %101 = arith.subf %95, %100 : vector<4x256xf32>
    %102 = arith.mulf %101, %101 : vector<4x256xf32>
    %cst_74 = arith.constant dense<0.000000e+00> : vector<4xf32>
    %103 = vector.multi_reduction <add>, %102, %cst_74 [1] : vector<4x256xf32> to vector<4xf32>
    %104 = vector.shape_cast %103 : vector<4xf32> to vector<4x1xf32>
    %cst_75 = arith.constant 3.906250e-03 : f32
    %105 = vector.broadcast %cst_75 : f32 to vector<4x1xf32>
    %106 = arith.mulf %104, %105 : vector<4x1xf32>
    %cst_76 = arith.constant 9.99999974E-6 : f32
    %107 = vector.broadcast %cst_76 : f32 to vector<4x1xf32>
    %108 = arith.addf %106, %107 : vector<4x1xf32>
    %109 = math.rsqrt %108 : vector<4x1xf32>
    %110 = vector.broadcast %109 : vector<4x1xf32> to vector<4x256xf32>
    %111 = arith.mulf %101, %110 : vector<4x256xf32>
    %cst_77 = arith.constant 0.000000e+00 : f32
    %112 = vector.broadcast %cst_77 : f32 to vector<4x256xf32>
    %113 = arith.maximumf %111, %112 : vector<4x256xf32>
    %c17_i32_78 = arith.constant 17 : i32
    %114 = tpu.dynamic_rotate %113 by %c17_i32_78 dim 1 : vector<4x256xf32>, i32 -> vector<4x256xf32>
    %c0_79 = arith.constant 0 : index
    %c0_80 = arith.constant 0 : index
    %115 = vector.load %arg2[%c0_79, %c0_80] : memref<9x256xf32, #tpu.memory_space<vmem>>, vector<1x256xf32>
    %116 = vector.broadcast %115 : vector<1x256xf32> to vector<4x256xf32>
    %117 = arith.mulf %114, %116 : vector<4x256xf32>
    %118 = arith.truncf %117 : vector<4x256xf32> to vector<4x256xbf16>
    %cst_81 = arith.constant dense<0.000000e+00> : vector<4x256xf32>
    %119 = tpu.matmul %19, %118, %cst_81 {dimension_numbers = #tpu.dot_dimension_numbers<[1], [0], [0], [1], [0, 0, 1, 1], [], []>} : vector<4x4xbf16>, vector<4x256xbf16>, vector<4x256xf32> -> vector<4x256xf32>
    %c16_i32_82 = arith.constant 16 : i32
    %120 = tpu.dynamic_rotate %113 by %c16_i32_82 dim 1 : vector<4x256xf32>, i32 -> vector<4x256xf32>
    %c1_83 = arith.constant 1 : index
    %c0_84 = arith.constant 0 : index
    %121 = vector.load %arg2[%c1_83, %c0_84] : memref<9x256xf32, #tpu.memory_space<vmem>>, vector<1x256xf32>
    %122 = vector.broadcast %121 : vector<1x256xf32> to vector<4x256xf32>
    %123 = arith.mulf %120, %122 : vector<4x256xf32>
    %124 = arith.truncf %123 : vector<4x256xf32> to vector<4x256xbf16>
    %cst_85 = arith.constant dense<0.000000e+00> : vector<4x256xf32>
    %125 = tpu.matmul %21, %124, %cst_85 {dimension_numbers = #tpu.dot_dimension_numbers<[1], [0], [0], [1], [0, 0, 1, 1], [], []>} : vector<4x4xbf16>, vector<4x256xbf16>, vector<4x256xf32> -> vector<4x256xf32>
    %126 = arith.addf %119, %125 : vector<4x256xf32>
    %c15_i32_86 = arith.constant 15 : i32
    %127 = tpu.dynamic_rotate %113 by %c15_i32_86 dim 1 : vector<4x256xf32>, i32 -> vector<4x256xf32>
    %c2_87 = arith.constant 2 : index
    %c0_88 = arith.constant 0 : index
    %128 = vector.load %arg2[%c2_87, %c0_88] : memref<9x256xf32, #tpu.memory_space<vmem>>, vector<1x256xf32>
    %129 = vector.broadcast %128 : vector<1x256xf32> to vector<4x256xf32>
    %130 = arith.mulf %127, %129 : vector<4x256xf32>
    %131 = arith.truncf %130 : vector<4x256xf32> to vector<4x256xbf16>
    %cst_89 = arith.constant dense<0.000000e+00> : vector<4x256xf32>
    %132 = tpu.matmul %23, %131, %cst_89 {dimension_numbers = #tpu.dot_dimension_numbers<[1], [0], [0], [1], [0, 0, 1, 1], [], []>} : vector<4x4xbf16>, vector<4x256xbf16>, vector<4x256xf32> -> vector<4x256xf32>
    %133 = arith.addf %126, %132 : vector<4x256xf32>
    %c1_i32_90 = arith.constant 1 : i32
    %134 = tpu.dynamic_rotate %113 by %c1_i32_90 dim 1 : vector<4x256xf32>, i32 -> vector<4x256xf32>
    %c3_91 = arith.constant 3 : index
    %c0_92 = arith.constant 0 : index
    %135 = vector.load %arg2[%c3_91, %c0_92] : memref<9x256xf32, #tpu.memory_space<vmem>>, vector<1x256xf32>
    %136 = vector.broadcast %135 : vector<1x256xf32> to vector<4x256xf32>
    %137 = arith.mulf %134, %136 : vector<4x256xf32>
    %138 = arith.truncf %137 : vector<4x256xf32> to vector<4x256xbf16>
    %cst_93 = arith.constant dense<0.000000e+00> : vector<4x256xf32>
    %139 = tpu.matmul %25, %138, %cst_93 {dimension_numbers = #tpu.dot_dimension_numbers<[1], [0], [0], [1], [0, 0, 1, 1], [], []>} : vector<4x4xbf16>, vector<4x256xbf16>, vector<4x256xf32> -> vector<4x256xf32>
    %140 = arith.addf %133, %139 : vector<4x256xf32>
    %141 = arith.truncf %113 : vector<4x256xf32> to vector<4x256xbf16>
    %cst_94 = arith.constant dense<0.000000e+00> : vector<4x256xf32>
    %142 = tpu.matmul %27, %141, %cst_94 {dimension_numbers = #tpu.dot_dimension_numbers<[1], [0], [0], [1], [0, 0, 1, 1], [], []>} : vector<4x4xbf16>, vector<4x256xbf16>, vector<4x256xf32> -> vector<4x256xf32>
    %143 = arith.addf %140, %142 : vector<4x256xf32>
    %c255_i32_95 = arith.constant 255 : i32
    %144 = tpu.dynamic_rotate %113 by %c255_i32_95 dim 1 : vector<4x256xf32>, i32 -> vector<4x256xf32>
    %c5_96 = arith.constant 5 : index
    %c0_97 = arith.constant 0 : index
    %145 = vector.load %arg2[%c5_96, %c0_97] : memref<9x256xf32, #tpu.memory_space<vmem>>, vector<1x256xf32>
    %146 = vector.broadcast %145 : vector<1x256xf32> to vector<4x256xf32>
    %147 = arith.mulf %144, %146 : vector<4x256xf32>
    %148 = arith.truncf %147 : vector<4x256xf32> to vector<4x256xbf16>
    %cst_98 = arith.constant dense<0.000000e+00> : vector<4x256xf32>
    %149 = tpu.matmul %29, %148, %cst_98 {dimension_numbers = #tpu.dot_dimension_numbers<[1], [0], [0], [1], [0, 0, 1, 1], [], []>} : vector<4x4xbf16>, vector<4x256xbf16>, vector<4x256xf32> -> vector<4x256xf32>
    %150 = arith.addf %143, %149 : vector<4x256xf32>
    %c241_i32_99 = arith.constant 241 : i32
    %151 = tpu.dynamic_rotate %113 by %c241_i32_99 dim 1 : vector<4x256xf32>, i32 -> vector<4x256xf32>
    %c6_100 = arith.constant 6 : index
    %c0_101 = arith.constant 0 : index
    %152 = vector.load %arg2[%c6_100, %c0_101] : memref<9x256xf32, #tpu.memory_space<vmem>>, vector<1x256xf32>
    %153 = vector.broadcast %152 : vector<1x256xf32> to vector<4x256xf32>
    %154 = arith.mulf %151, %153 : vector<4x256xf32>
    %155 = arith.truncf %154 : vector<4x256xf32> to vector<4x256xbf16>
    %cst_102 = arith.constant dense<0.000000e+00> : vector<4x256xf32>
    %156 = tpu.matmul %31, %155, %cst_102 {dimension_numbers = #tpu.dot_dimension_numbers<[1], [0], [0], [1], [0, 0, 1, 1], [], []>} : vector<4x4xbf16>, vector<4x256xbf16>, vector<4x256xf32> -> vector<4x256xf32>
    %157 = arith.addf %150, %156 : vector<4x256xf32>
    %c240_i32_103 = arith.constant 240 : i32
    %158 = tpu.dynamic_rotate %113 by %c240_i32_103 dim 1 : vector<4x256xf32>, i32 -> vector<4x256xf32>
    %c7_104 = arith.constant 7 : index
    %c0_105 = arith.constant 0 : index
    %159 = vector.load %arg2[%c7_104, %c0_105] : memref<9x256xf32, #tpu.memory_space<vmem>>, vector<1x256xf32>
    %160 = vector.broadcast %159 : vector<1x256xf32> to vector<4x256xf32>
    %161 = arith.mulf %158, %160 : vector<4x256xf32>
    %162 = arith.truncf %161 : vector<4x256xf32> to vector<4x256xbf16>
    %cst_106 = arith.constant dense<0.000000e+00> : vector<4x256xf32>
    %163 = tpu.matmul %33, %162, %cst_106 {dimension_numbers = #tpu.dot_dimension_numbers<[1], [0], [0], [1], [0, 0, 1, 1], [], []>} : vector<4x4xbf16>, vector<4x256xbf16>, vector<4x256xf32> -> vector<4x256xf32>
    %164 = arith.addf %157, %163 : vector<4x256xf32>
    %c239_i32_107 = arith.constant 239 : i32
    %165 = tpu.dynamic_rotate %113 by %c239_i32_107 dim 1 : vector<4x256xf32>, i32 -> vector<4x256xf32>
    %c8_108 = arith.constant 8 : index
    %c0_109 = arith.constant 0 : index
    %166 = vector.load %arg2[%c8_108, %c0_109] : memref<9x256xf32, #tpu.memory_space<vmem>>, vector<1x256xf32>
    %167 = vector.broadcast %166 : vector<1x256xf32> to vector<4x256xf32>
    %168 = arith.mulf %165, %167 : vector<4x256xf32>
    %169 = arith.truncf %168 : vector<4x256xf32> to vector<4x256xbf16>
    %cst_110 = arith.constant dense<0.000000e+00> : vector<4x256xf32>
    %170 = tpu.matmul %35, %169, %cst_110 {dimension_numbers = #tpu.dot_dimension_numbers<[1], [0], [0], [1], [0, 0, 1, 1], [], []>} : vector<4x4xbf16>, vector<4x256xbf16>, vector<4x256xf32> -> vector<4x256xf32>
    %171 = arith.addf %164, %170 : vector<4x256xf32>
    %cst_111 = arith.constant dense<0.000000e+00> : vector<4xf32>
    %172 = vector.multi_reduction <add>, %171, %cst_111 [1] : vector<4x256xf32> to vector<4xf32>
    %173 = vector.shape_cast %172 : vector<4xf32> to vector<4x1xf32>
    %cst_112 = arith.constant 3.906250e-03 : f32
    %174 = vector.broadcast %cst_112 : f32 to vector<4x1xf32>
    %175 = arith.mulf %173, %174 : vector<4x1xf32>
    %176 = vector.broadcast %175 : vector<4x1xf32> to vector<4x256xf32>
    %177 = arith.subf %171, %176 : vector<4x256xf32>
    %178 = arith.mulf %177, %177 : vector<4x256xf32>
    %cst_113 = arith.constant dense<0.000000e+00> : vector<4xf32>
    %179 = vector.multi_reduction <add>, %178, %cst_113 [1] : vector<4x256xf32> to vector<4xf32>
    %180 = vector.shape_cast %179 : vector<4xf32> to vector<4x1xf32>
    %cst_114 = arith.constant 3.906250e-03 : f32
    %181 = vector.broadcast %cst_114 : f32 to vector<4x1xf32>
    %182 = arith.mulf %180, %181 : vector<4x1xf32>
    %cst_115 = arith.constant 9.99999974E-6 : f32
    %183 = vector.broadcast %cst_115 : f32 to vector<4x1xf32>
    %184 = arith.addf %182, %183 : vector<4x1xf32>
    %185 = math.rsqrt %184 : vector<4x1xf32>
    %186 = vector.broadcast %185 : vector<4x1xf32> to vector<4x256xf32>
    %187 = arith.mulf %177, %186 : vector<4x256xf32>
    %c0_116 = arith.constant 0 : index
    %c0_117 = arith.constant 0 : index
    %c0_118 = arith.constant 0 : index
    %188 = vector.load %arg1[%c0_116, %c0_117, %c0_118] : memref<1x4x256xf32, #tpu.memory_space<vmem>>, vector<1x4x256xf32>
    %189 = vector.shape_cast %188 : vector<1x4x256xf32> to vector<4x256xf32>
    %190 = arith.addf %187, %189 : vector<4x256xf32>
    %c0_119 = arith.constant 0 : index
    %c0_120 = arith.constant 0 : index
    %c0_121 = arith.constant 0 : index
    %191 = vector.load %arg5[%c0_119, %c0_120, %c0_121] : memref<1x4x256xf32, #tpu.memory_space<vmem>>, vector<1x4x256xf32>
    %192 = vector.shape_cast %191 : vector<1x4x256xf32> to vector<4x256xf32>
    %193 = vector.shape_cast %190 : vector<4x256xf32> to vector<1x4x256xf32>
    tpu.vector_store %arg5[%c0_119, %c0_120, %c0_121], %193 {strides = array<i32>} : memref<1x4x256xf32, #tpu.memory_space<vmem>>, vector<1x4x256xf32>,
    return
  }
  func.func @transform_0(%arg0: i32) -> (i32, i32, i32) {
    %c0_i32 = arith.constant 0 : i32
    %c0_i32_0 = arith.constant 0 : i32
    %c0_i32_1 = arith.constant 0 : i32
    return %arg0, %c0_i32, %c0_i32_0 : i32, i32, i32
  }
  func.func @transform_1(%arg0: i32) -> (i32, i32) {
    %c0_i32 = arith.constant 0 : i32
    %c0_i32_0 = arith.constant 0 : i32
    %c0_i32_1 = arith.constant 0 : i32
    return %c0_i32, %c0_i32_0 : i32, i32
  }
  func.func @transform_2(%arg0: i32) -> (i32, i32, i32) {
    %c0_i32 = arith.constant 0 : i32
    %c0_i32_0 = arith.constant 0 : i32
    %c0_i32_1 = arith.constant 0 : i32
    %c0_i32_2 = arith.constant 0 : i32
    return %c0_i32, %c0_i32_0, %c0_i32_1 : i32, i32, i32
  }
  func.func @transform_3(%arg0: i32) -> (i32, i32, i32) {
    %c0_i32 = arith.constant 0 : i32
    %c0_i32_0 = arith.constant 0 : i32
    %c0_i32_1 = arith.constant 0 : i32
    %c0_i32_2 = arith.constant 0 : i32
    return %c0_i32, %c0_i32_0, %c0_i32_1 : i32, i32, i32
  }
  func.func @transform_4(%arg0: i32) -> (i32, i32, i32) {
    %c0_i32 = arith.constant 0 : i32
    %c0_i32_0 = arith.constant 0 : i32
    %c0_i32_1 = arith.constant 0 : i32
    return %arg0, %c0_i32, %c0_i32_0 : i32, i32, i32
  }
}

</mosaic_0001>

<llo_original>
// kernel: tpu_custom_call.1
$region0: #{tpu_custom_call.1}
  #allocation0 [shape = 'u32[]', space=smem, size = 0x4, offset = 0x4, fixed_abs, tag = 'smem constant byte address 0x4 - core index']
  #allocation1 [shape = 'u32[144,128]{1,0:T(1,128)}', space=vmem, size = 0x12000, scoped, tag = 'internal scratch']
  %s0 = inlined_call_operand.vmem [shape: f32[2,4,256], index: 0, kind: input, shape index: {}]
  %s1 = inlined_call_operand.vmem [shape: f32[9,256], index: 1, kind: input, shape index: {}]
  %s2 = inlined_call_operand.vmem [shape: bf16[9,4,4], index: 2, kind: input, shape index: {}]
  %s3 = inlined_call_operand.vmem [shape: bf16[9,4,4], index: 3, kind: input, shape index: {}]
  %s4 = inlined_call_operand.hbm [shape: f32[2,4,256], index: 4, kind: output, shape index: {}]
  %s5 = sld [smem:[#allocation0]]
  $region49: #{tpu_custom_call.1} parent=0
    _
  %s7 = ssub.s32 1, %s5
  %s8 = scalar_select 0, %s7, %s5
  $region1: #{tpu_custom_call.1} parent=0
    #allocation2 [shape = 'u8[8192]{0}', space=vmem, size = 0x2000, scoped, tag = 'output window, operand 0']
    #allocation3 [shape = 's32[2]{0}', space=sflag, size = 0x8, scoped, tag = 'scoped memory for tpu_custom_call.1']
    %9 = vsyncpa [#allocation3], 0
    %s10 = scalar_lea.sflag [#allocation3], 1
    %11 = vsyncpa %s10, 0
    loop: start=0, step=1, limit=4
    $region2: #{tpu_custom_call.1} parent=1 // loop_pre_header
      _
    $region3: #{tpu_custom_call.1} parent=1 // loop_header
      %s13 = sphi 0, %s17
      %p14 = scmp.ge.s32.totalorder %s13, 4
      %s23 = sphi 0, %s25
      %s26 = sphi 0, %s23
      %s27 = sphi 0, %s26
      %s43 = sphi 0, %s27
      %s47 = sphi 0, %s47
      %s49 = sphi 0, %s47
      %s50 = sphi 0, %s49
      %s64 = sphi 0, %s50
      %s68 = sphi 0, %s68
      %s70 = sphi 0, %s68
      %s71 = sphi 0, %s70
      %s85 = sphi 0, %s71
      %s89 = sphi 0, %s89
      %s91 = sphi 0, %s89
      %s92 = sphi 0, %s91
      %s106 = sphi 0, %s92
      %s112 = sphi 0, %s114
      %s115 = sphi 0, %s112
      %s116 = sphi 0, %s115
      %s132 = sphi 0, %s116
    $region4: #{tpu_custom_call.1} parent=1 // loop_header_branch
      %16 = sbr.rel (%p14) target = $region8
    $region5: #{tpu_custom_call.1} parent=1 // loop_body
      %s18 = ssub.s32 %s13, 1
      %s19 = ssub.s32 %s13, 2
      %s20 = sadd.s32 %s13, 1
      %s21 = ssub.s32 %s13, %s20
      %p22 = scmp.eq.s32.totalorder %s21, 0
      %s24 = sadd.s32 %s23, 1
      %s25 = scalar_select %p22, %s23, %s24
      %p28 = pneg %p22
      %p29 = scmp.eq.s32.totalorder %s13, 1
      %p30 = por %p28, %p29
      %p31 = scmp.ne.s32.totalorder %s23, %s26
      %p32 = scmp.eq.s32.totalorder %s13, 0
      %p33 = por %p31, %p32
      %p34 = scmp.ne.s32.totalorder %s23, %s26
      %p35 = scmp.eq.s32.totalorder %s18, 1
      %p36 = por %p34, %p35
      %p37 = scmp.ne.s32.totalorder %s26, %s27
      %p38 = scmp.eq.s32.totalorder %s18, 0
      %p39 = por %p37, %p38
      %p40 = scmp.ne.s32.totalorder %s26, %s27
      %p41 = scmp.eq.s32.totalorder %s19, 1
      %p42 = por %p40, %p41
      %p44 = scmp.ne.s32.totalorder %s27, %s43
      %p45 = scmp.eq.s32.totalorder %s19, 0
      %p46 = por %p44, %p45
      %s48 = sadd.s32 %s47, 1
      %p51 = scmp.eq.s32.totalorder %s13, 1
      %p52 = scmp.ne.s32.totalorder %s47, %s49
      %p53 = scmp.eq.s32.totalorder %s13, 0
      %p54 = por %p52, %p53
      %p55 = scmp.ne.s32.totalorder %s47, %s49
      %p56 = scmp.eq.s32.totalorder %s18, 1
      %p57 = por %p55, %p56
      %p58 = scmp.ne.s32.totalorder %s49, %s50
      %p59 = scmp.eq.s32.totalorder %s18, 0
      %p60 = por %p58, %p59
      %p61 = scmp.ne.s32.totalorder %s49, %s50
      %p62 = scmp.eq.s32.totalorder %s19, 1
      %p63 = por %p61, %p62
      %p65 = scmp.ne.s32.totalorder %s50, %s64
      %p66 = scmp.eq.s32.totalorder %s19, 0
      %p67 = por %p65, %p66
      %s69 = sadd.s32 %s68, 1
      %p72 = scmp.eq.s32.totalorder %s13, 1
      %p73 = scmp.ne.s32.totalorder %s68, %s70
      %p74 = scmp.eq.s32.totalorder %s13, 0
      %p75 = por %p73, %p74
      %p76 = scmp.ne.s32.totalorder %s68, %s70
      %p77 = scmp.eq.s32.totalorder %s18, 1
      %p78 = por %p76, %p77
      %p79 = scmp.ne.s32.totalorder %s70, %s71
      %p80 = scmp.eq.s32.totalorder %s18, 0
      %p81 = por %p79, %p80
      %p82 = scmp.ne.s32.totalorder %s70, %s71
      %p83 = scmp.eq.s32.totalorder %s19, 1
      %p84 = por %p82, %p83
      %p86 = scmp.ne.s32.totalorder %s71, %s85
      %p87 = scmp.eq.s32.totalorder %s19, 0
      %p88 = por %p86, %p87
      %s90 = sadd.s32 %s89, 1
      %p93 = scmp.eq.s32.totalorder %s13, 1
      %p94 = scmp.ne.s32.totalorder %s89, %s91
      %p95 = scmp.eq.s32.totalorder %s13, 0
      %p96 = por %p94, %p95
      %p97 = scmp.ne.s32.totalorder %s89, %s91
      %p98 = scmp.eq.s32.totalorder %s18, 1
      %p99 = por %p97, %p98
      %p100 = scmp.ne.s32.totalorder %s91, %s92
      %p101 = scmp.eq.s32.totalorder %s18, 0
      %p102 = por %p100, %p101
      %p103 = scmp.ne.s32.totalorder %s91, %s92
      %p104 = scmp.eq.s32.totalorder %s19, 1
      %p105 = por %p103, %p104
      %p107 = scmp.ne.s32.totalorder %s92, %s106
      %p108 = scmp.eq.s32.totalorder %s19, 0
      %p109 = por %p107, %p108
      %s110 = ssub.s32 %s13, %s20
      %p111 = scmp.eq.s32.totalorder %s110, 0
      %s113 = sadd.s32 %s112, 1
      %s114 = scalar_select %p111, %s112, %s113
      %p117 = pneg %p111
      %p118 = scmp.eq.s32.totalorder %s13, 1
      %p119 = por %p117, %p118
      %p120 = scmp.ne.s32.totalorder %s112, %s115
      %p121 = scmp.eq.s32.totalorder %s13, 0
      %p122 = por %p120, %p121
      %p123 = scmp.ne.s32.totalorder %s112, %s115
      %p124 = scmp.eq.s32.totalorder %s18, 1
      %p125 = por %p123, %p124
      %p126 = scmp.ne.s32.totalorder %s115, %s116
      %p127 = scmp.eq.s32.totalorder %s18, 0
      %p128 = por %p126, %p127
      %p129 = scmp.ne.s32.totalorder %s115, %s116
      %p130 = scmp.eq.s32.totalorder %s19, 1
      %p131 = por %p129, %p130
      %p133 = scmp.ne.s32.totalorder %s116, %s132
      %p134 = scmp.eq.s32.totalorder %s19, 0
      %p135 = por %p133, %p134
      %p136 = scmp.le.s32.totalorder 1, %s13
      %p137 = scmp.lt.s32.totalorder %s13, 3
      %p138 = pnand %p136, %p137
      %p139 = pneg %p138
      // Predicated region
      $region9: #{tpu_custom_call.1} parent=5 // pred_check
        _
      $region10: #{tpu_custom_call.1} parent=5 // pred_check_branch
        %141 = sbr.rel (%p138) target = $region12
      $region11: #{tpu_custom_call.1} parent=5 // pred_region
        %s142 = ssub.s32 %s13, 1
        // Predicated region
        $region13: #{tpu_custom_call.1} parent=11 // pred_check
          %p143 = pneg %p60
        $region14: #{tpu_custom_call.1} parent=11 // pred_check_branch
          %145 = sbr.rel (%p143) target = $region16
        $region15: #{tpu_custom_call.1} parent=11 // pred_region
          _
        $region16: #{tpu_custom_call.1} parent=11 // pred_fallthru
          _
        // Predicated region
        $region17: #{tpu_custom_call.1} parent=11 // pred_check
          %p146 = pneg %p81
        $region18: #{tpu_custom_call.1} parent=11 // pred_check_branch
          %148 = sbr.rel (%p146) target = $region20
        $region19: #{tpu_custom_call.1} parent=11 // pred_region
          _
        $region20: #{tpu_custom_call.1} parent=11 // pred_fallthru
          _
        // Predicated region
        $region21: #{tpu_custom_call.1} parent=11 // pred_check
          %p149 = pneg %p102
        $region22: #{tpu_custom_call.1} parent=11 // pred_check_branch
          %151 = sbr.rel (%p149) target = $region24
        $region23: #{tpu_custom_call.1} parent=11 // pred_region
          _
        $region24: #{tpu_custom_call.1} parent=11 // pred_fallthru
          _
      $region12: #{tpu_custom_call.1} parent=5 // pred_fallthru
        _
      %p152 = scmp.lt.s32.totalorder %s13, 2
      // Predicated region
      $region25: #{tpu_custom_call.1} parent=5 // pred_check
        %p153 = pneg %p152
      $region26: #{tpu_custom_call.1} parent=5 // pred_check_branch
        %155 = sbr.rel (%p153) target = $region28
      $region27: #{tpu_custom_call.1} parent=5 // pred_region
        // Predicated region
        $region29: #{tpu_custom_call.1} parent=27 // pred_check
          %p156 = pneg %p33
        $region30: #{tpu_custom_call.1} parent=27 // pred_check_branch
          %158 = sbr.rel (%p156) target = $region32
        $region31: #{tpu_custom_call.1} parent=27 // pred_region
          %p159 = scmp.lt.s32.totalorder %s13, 1
          %s160 = scalar_select %p159, %s13, 1
          %s161 = smul.addr %s160, 2
          %s162 = smul.addr %s161, 4
          %s163 = scalar_lea.vmem %s0, %s162
        $region32: #{tpu_custom_call.1} parent=27 // pred_fallthru
          _
      $region28: #{tpu_custom_call.1} parent=5 // pred_fallthru
        _
      %p164 = scmp.le.s32.totalorder 1, %s13
      %p165 = scmp.lt.s32.totalorder %s13, 3
      %p166 = pnand %p164, %p165
      %p167 = pneg %p166
      // Predicated region
      $region33: #{tpu_custom_call.1} parent=5 // pred_check
        _
      $region34: #{tpu_custom_call.1} parent=5 // pred_check_branch
        %169 = sbr.rel (%p166) target = $region36
      $region35: #{tpu_custom_call.1} parent=5 // pred_region
        %s170 = ssub.s32 %s13, 1
        %p171 = scmp.lt.s32.totalorder %s18, 1
        %s172 = scalar_select %p171, %s18, 1
        %s173 = smul.addr %s172, 2
        %s174 = smul.addr %s173, 4
        %s175 = scalar_lea.vmem %s0, %s174
        %p176 = pneg %p39
        %p177 = pneg %p36
        %p178 = pneg %p60
        %p179 = pneg %p57
        %p180 = pneg %p81
        %p181 = pneg %p78
        %p182 = pneg %p102
        %p183 = pneg %p99
        %p184 = pneg %p128
        %p185 = pneg %p125
        %s186 = sand.u32 %s115, 1
        %s187 = scalar_lea.sflag [#allocation3], %s186
        %s188 = sand.u32 %s115, 1
        %s189 = smul.addr %s188, 8
        %s190 = scalar_lea.vmem [#allocation2], %s189
        %p191 = scmp.lt.s32.totalorder %s18, 1
        %s192 = scalar_select %p191, %s18, 1
        %s193 = smul.addr %s192, 2
        %s194 = smul.addr %s193, 4
        %s195 = scalar_lea.vmem %s0, %s194
        %v197 = vld [vmem:[%s2] sm:$0x3]
        %s198 = scalar_lea.vmem %s2, 2
        %v199 = vld [vmem:[%s198] sm:$0x3]
        %s200 = scalar_lea.vmem %s2, 4
        %v201 = vld [vmem:[%s200] sm:$0x3]
        %s202 = scalar_lea.vmem %s2, 6
        %v203 = vld [vmem:[%s202] sm:$0x3]
        %s204 = scalar_lea.vmem %s2, 8
        %v205 = vld [vmem:[%s204] sm:$0x3]
        %s206 = scalar_lea.vmem %s2, 10
        %v207 = vld [vmem:[%s206] sm:$0x3]
        %s208 = scalar_lea.vmem %s2, 12
        %v209 = vld [vmem:[%s208] sm:$0x3]
        %s210 = scalar_lea.vmem %s2, 14
        %v211 = vld [vmem:[%s210] sm:$0x3]
        %s212 = scalar_lea.vmem %s2, 16
        %v213 = vld [vmem:[%s212] sm:$0x3]
        %v214 = vld [vmem:[%s3] sm:$0x3]
        %s215 = scalar_lea.vmem %s3, 2
        %v216 = vld [vmem:[%s215] sm:$0x3]
        %s217 = scalar_lea.vmem %s3, 4
        %v218 = vld [vmem:[%s217] sm:$0x3]
        %s219 = scalar_lea.vmem %s3, 6
        %v220 = vld [vmem:[%s219] sm:$0x3]
        %s221 = scalar_lea.vmem %s3, 8
        %v222 = vld [vmem:[%s221] sm:$0x3]
        %s223 = scalar_lea.vmem %s3, 10
        %v224 = vld [vmem:[%s223] sm:$0x3]
        %s225 = scalar_lea.vmem %s3, 12
        %v226 = vld [vmem:[%s225] sm:$0x3]
        %s227 = scalar_lea.vmem %s3, 14
        %v228 = vld [vmem:[%s227] sm:$0x3]
        %s229 = scalar_lea.vmem %s3, 16
        %v230 = vld [vmem:[%s229] sm:$0x3]
        %v231 = vld [vmem:[%s195] sm:$0xff]
        %v233 = vcombine.high %v231, %v231
        %235 = vrot.lane.b32.xlu0 %v231, 17
        %v236 = vpop.permute.xlu0 %235
        %237 = vrot.lane.b32.xlu0 %v233, 17
        %v238 = vpop.permute.xlu0 %237
        %v239 = vlaneseq
        %v240 = vand.u32 %v239, 127
        %vm241 = vcmp.lt.s32.totalorder %v240, 17
        %v242 = vsel %vm241, %v236, %v238
        %v243 = vsel %vm241, %v238, %v236
        %v244 = vld [vmem:[%s1] ss:$8 sm:$0x3]
        %v246 = vlaneseq
        %v247 = vshrl.u32 %v246, 7
        %v248 = vsub.s32 0, %v247
        %v249 = vrot.slane %v244, %v248
        %v250 = vlaneseq
        %v251 = vshrl.u32 %v250, 7
        %v252 = vsub.s32 1, %v251
        %v253 = vrot.slane %v244, %v252
        %v256 = vmul.f32 %v243, %v249
        %v257 = vmul.f32 %v242, %v253
        %v258 = vpack.c.bf16 %v256, %v256
        %v259 = vpack.c.bf16 %v257, %v257
        %260 = vrot.lane.b32.xlu0 %v231, 16
        %v261 = vpop.permute.xlu0 %260
        %262 = vrot.lane.b32.xlu0 %v233, 16
        %v263 = vpop.permute.xlu0 %262
        %vm264 = vcmp.lt.s32.totalorder %v240, 16
        %v265 = vsel %vm264, %v261, %v263
        %v266 = vsel %vm264, %v263, %v261
        %s267 = scalar_lea.vmem %s1, 1
        %v268 = vld [vmem:[%s267] ss:$8 sm:$0x3]
        %v270 = vlaneseq
        %v271 = vshrl.u32 %v270, 7
        %v272 = vsub.s32 0, %v271
        %v273 = vrot.slane %v268, %v272
        %v274 = vlaneseq
        %v275 = vshrl.u32 %v274, 7
        %v276 = vsub.s32 1, %v275
        %v277 = vrot.slane %v268, %v276
        %v280 = vmul.f32 %v266, %v273
        %v281 = vmul.f32 %v265, %v277
        %v282 = vpack.c.bf16 %v280, %v280
        %v283 = vpack.c.bf16 %v281, %v281
        %vm284 = vcmask 31744
        %v286 = vsel %vm284, %v199, 0
        %vm288 = vcmask 1041408
        %v290 = vsel %vm288, %v282, 0
        %v293 = vsel %vm288, %v283, 0
        %295 = vmatprep.subr.bf16.mxu0 %v293
        %296 = vmatpush1.bf16.msra.mxu0 %v290
        %297 = vmatprep.subr.bf16.mxu0 0
        %298 = vmatpush1.bf16.msra.mxu0 0
        %299 = vmatprep.subr.bf16.mxu0 0
        %300 = vmatpush1.bf16.msra.mxu0 0
        %301 = vmatprep.subr.bf16.mxu0 0
        %302 = vmatpush1.bf16.msra.mxu0 0
        %303 = vmatprep.subr.bf16.mxu0 0
        %304 = vmatpush1.bf16.msra.mxu0 0
        %305 = vmatprep.subr.bf16.mxu0 0
        %306 = vmatpush1.bf16.msra.mxu0 0
        %307 = vmatprep.subr.bf16.mxu0 0
        %308 = vmatpush1.bf16.msra.mxu0 0
        %309 = vmatprep.subr.bf16.mxu0 0
        %310 = vmatpush1.bf16.msra.mxu0 0
        %311 = vmatprep.subr.bf16.mxu0 0
        %312 = vmatpush1.bf16.msra.mxu0 0
        %313 = vmatprep.subr.bf16.mxu0 0
        %314 = vmatpush1.bf16.msra.mxu0 0
        %315 = vmatprep.subr.bf16.mxu0 0
        %316 = vmatpush1.bf16.msra.mxu0 0
        %317 = vmatprep.subr.bf16.mxu0 0
        %318 = vmatpush1.bf16.msra.mxu0 0
        %319 = vmatprep.subr.bf16.mxu0 0
        %320 = vmatpush1.bf16.msra.mxu0 0
        %321 = vmatprep.subr.bf16.mxu0 0
        %322 = vmatpush1.bf16.msra.mxu0 0
        %323 = vmatprep.subr.bf16.mxu0 0
        %324 = vmatpush1.bf16.msra.mxu0 0
        %325 = vmatprep.subr.bf16.mxu0 0
        %326 = vmatpush1.bf16.msra.mxu0 0
        %327 = vmatprep.mubr.bf16.mxu0 0
        %328 = vmatmul.mubr.bf16.gmra.mrb[0].mxu0 %v286
        %v329 = vpop.f32.mrb[0].mxu0
        %v330 = vadd.f32 0.0, %v329
        %v331 = vpop.f32.mrb[0].mxu0
        %v332 = vadd.f32 0.0, %v331
        %v333 = vpop.f32.mrb[0].mxu0
        %v334 = vpop.f32.mrb[0].mxu0
        %335 = vdwg.mxu0
        %v337 = vsel %vm284, %v197, 0
        %v340 = vsel %vm288, %v258, 0
        %v343 = vsel %vm288, %v259, 0
        %345 = vmatprep.subr.bf16.mxu0 %v343
        %346 = vmatpush1.bf16.msra.mxu0 %v340
        %347 = vmatprep.subr.bf16.mxu0 0
        %348 = vmatpush1.bf16.msra.mxu0 0
        %349 = vmatprep.subr.bf16.mxu0 0
        %350 = vmatpush1.bf16.msra.mxu0 0
        %351 = vmatprep.subr.bf16.mxu0 0
        %352 = vmatpush1.bf16.msra.mxu0 0
        %353 = vmatprep.subr.bf16.mxu0 0
        %354 = vmatpush1.bf16.msra.mxu0 0
        %355 = vmatprep.subr.bf16.mxu0 0
        %356 = vmatpush1.bf16.msra.mxu0 0
        %357 = vmatprep.subr.bf16.mxu0 0
        %358 = vmatpush1.bf16.msra.mxu0 0
        %359 = vmatprep.subr.bf16.mxu0 0
        %360 = vmatpush1.bf16.msra.mxu0 0
        %361 = vmatprep.subr.bf16.mxu0 0
        %362 = vmatpush1.bf16.msra.mxu0 0
        %363 = vmatprep.subr.bf16.mxu0 0
        %364 = vmatpush1.bf16.msra.mxu0 0
        %365 = vmatprep.subr.bf16.mxu0 0
        %366 = vmatpush1.bf16.msra.mxu0 0
        %367 = vmatprep.subr.bf16.mxu0 0
        %368 = vmatpush1.bf16.msra.mxu0 0
        %369 = vmatprep.subr.bf16.mxu0 0
        %370 = vmatpush1.bf16.msra.mxu0 0
        %371 = vmatprep.subr.bf16.mxu0 0
        %372 = vmatpush1.bf16.msra.mxu0 0
        %373 = vmatprep.subr.bf16.mxu0 0
        %374 = vmatpush1.bf16.msra.mxu0 0
        %375 = vmatprep.subr.bf16.mxu0 0
        %376 = vmatpush1.bf16.msra.mxu0 0
        %377 = vmatprep.mubr.bf16.mxu0 0
        %378 = vmatmul.mubr.bf16.gmra.mrb[0].mxu0 %v337
        %v379 = vpop.f32.mrb[0].mxu0
        %v380 = vadd.f32 %v330, %v379
        %v381 = vpop.f32.mrb[0].mxu0
        %v382 = vadd.f32 %v332, %v381
        %v383 = vpop.f32.mrb[0].mxu0
        %v384 = vpop.f32.mrb[0].mxu0
        %385 = vdwg.mxu0
        %386 = vrot.lane.b32.xlu0 %v231, 15
        %v387 = vpop.permute.xlu0 %386
        %388 = vrot.lane.b32.xlu0 %v233, 15
        %v389 = vpop.permute.xlu0 %388
        %vm390 = vcmp.lt.s32.totalorder %v240, 15
        %v391 = vsel %vm390, %v387, %v389
        %v392 = vsel %vm390, %v389, %v387
        %s393 = scalar_lea.vmem %s1, 2
        %v394 = vld [vmem:[%s393] ss:$8 sm:$0x3]
        %v396 = vlaneseq
        %v397 = vshrl.u32 %v396, 7
        %v398 = vsub.s32 0, %v397
        %v399 = vrot.slane %v394, %v398
        %v400 = vlaneseq
        %v401 = vshrl.u32 %v400, 7
        %v402 = vsub.s32 1, %v401
        %v403 = vrot.slane %v394, %v402
        %v406 = vmul.f32 %v392, %v399
        %v407 = vmul.f32 %v391, %v403
        %v408 = vpack.c.bf16 %v406, %v406
        %v409 = vpack.c.bf16 %v407, %v407
        %v411 = vsel %vm284, %v201, 0
        %v414 = vsel %vm288, %v408, 0
        %v417 = vsel %vm288, %v409, 0
        %419 = vmatprep.subr.bf16.mxu0 %v417
        %420 = vmatpush1.bf16.msra.mxu0 %v414
        %421 = vmatprep.subr.bf16.mxu0 0
        %422 = vmatpush1.bf16.msra.mxu0 0
        %423 = vmatprep.subr.bf16.mxu0 0
        %424 = vmatpush1.bf16.msra.mxu0 0
        %425 = vmatprep.subr.bf16.mxu0 0
        %426 = vmatpush1.bf16.msra.mxu0 0
        %427 = vmatprep.subr.bf16.mxu0 0
        %428 = vmatpush1.bf16.msra.mxu0 0
        %429 = vmatprep.subr.bf16.mxu0 0
        %430 = vmatpush1.bf16.msra.mxu0 0
        %431 = vmatprep.subr.bf16.mxu0 0
        %432 = vmatpush1.bf16.msra.mxu0 0
        %433 = vmatprep.subr.bf16.mxu0 0
        %434 = vmatpush1.bf16.msra.mxu0 0
        %435 = vmatprep.subr.bf16.mxu0 0
        %436 = vmatpush1.bf16.msra.mxu0 0
        %437 = vmatprep.subr.bf16.mxu0 0
        %438 = vmatpush1.bf16.msra.mxu0 0
        %439 = vmatprep.subr.bf16.mxu0 0
        %440 = vmatpush1.bf16.msra.mxu0 0
        %441 = vmatprep.subr.bf16.mxu0 0
        %442 = vmatpush1.bf16.msra.mxu0 0
        %443 = vmatprep.subr.bf16.mxu0 0
        %444 = vmatpush1.bf16.msra.mxu0 0
        %445 = vmatprep.subr.bf16.mxu0 0
        %446 = vmatpush1.bf16.msra.mxu0 0
        %447 = vmatprep.subr.bf16.mxu0 0
        %448 = vmatpush1.bf16.msra.mxu0 0
        %449 = vmatprep.subr.bf16.mxu0 0
        %450 = vmatpush1.bf16.msra.mxu0 0
        %451 = vmatprep.mubr.bf16.mxu0 0
        %452 = vmatmul.mubr.bf16.gmra.mrb[0].mxu0 %v411
        %v453 = vpop.f32.mrb[0].mxu0
        %v454 = vadd.f32 0.0, %v453
        %v455 = vpop.f32.mrb[0].mxu0
        %v456 = vadd.f32 0.0, %v455
        %v457 = vpop.f32.mrb[0].mxu0
        %v458 = vpop.f32.mrb[0].mxu0
        %459 = vdwg.mxu0
        %v460 = vadd.f32 %v380, %v454
        %v461 = vadd.f32 %v382, %v456
        %462 = vrot.lane.b32.xlu0 %v231, 1
        %v463 = vpop.permute.xlu0 %462
        %464 = vrot.lane.b32.xlu0 %v233, 1
        %v465 = vpop.permute.xlu0 %464
        %vm466 = vcmp.lt.s32.totalorder %v240, 1
        %v467 = vsel %vm466, %v463, %v465
        %v468 = vsel %vm466, %v465, %v463
        %s469 = scalar_lea.vmem %s1, 3
        %v470 = vld [vmem:[%s469] ss:$8 sm:$0x3]
        %v472 = vlaneseq
        %v473 = vshrl.u32 %v472, 7
        %v474 = vsub.s32 0, %v473
        %v475 = vrot.slane %v470, %v474
        %v476 = vlaneseq
        %v477 = vshrl.u32 %v476, 7
        %v478 = vsub.s32 1, %v477
        %v479 = vrot.slane %v470, %v478
        %v482 = vmul.f32 %v468, %v475
        %v483 = vmul.f32 %v467, %v479
        %v484 = vpack.c.bf16 %v482, %v482
        %v485 = vpack.c.bf16 %v483, %v483
        %v487 = vsel %vm284, %v203, 0
        %v490 = vsel %vm288, %v484, 0
        %v493 = vsel %vm288, %v485, 0
        %495 = vmatprep.subr.bf16.mxu0 %v493
        %496 = vmatpush1.bf16.msra.mxu0 %v490
        %497 = vmatprep.subr.bf16.mxu0 0
        %498 = vmatpush1.bf16.msra.mxu0 0
        %499 = vmatprep.subr.bf16.mxu0 0
        %500 = vmatpush1.bf16.msra.mxu0 0
        %501 = vmatprep.subr.bf16.mxu0 0
        %502 = vmatpush1.bf16.msra.mxu0 0
        %503 = vmatprep.subr.bf16.mxu0 0
        %504 = vmatpush1.bf16.msra.mxu0 0
        %505 = vmatprep.subr.bf16.mxu0 0
        %506 = vmatpush1.bf16.msra.mxu0 0
        %507 = vmatprep.subr.bf16.mxu0 0
        %508 = vmatpush1.bf16.msra.mxu0 0
        %509 = vmatprep.subr.bf16.mxu0 0
        %510 = vmatpush1.bf16.msra.mxu0 0
        %511 = vmatprep.subr.bf16.mxu0 0
        %512 = vmatpush1.bf16.msra.mxu0 0
        %513 = vmatprep.subr.bf16.mxu0 0
        %514 = vmatpush1.bf16.msra.mxu0 0
        %515 = vmatprep.subr.bf16.mxu0 0
        %516 = vmatpush1.bf16.msra.mxu0 0
        %517 = vmatprep.subr.bf16.mxu0 0
        %518 = vmatpush1.bf16.msra.mxu0 0
        %519 = vmatprep.subr.bf16.mxu0 0
        %520 = vmatpush1.bf16.msra.mxu0 0
        %521 = vmatprep.subr.bf16.mxu0 0
        %522 = vmatpush1.bf16.msra.mxu0 0
        %523 = vmatprep.subr.bf16.mxu0 0
        %524 = vmatpush1.bf16.msra.mxu0 0
        %525 = vmatprep.subr.bf16.mxu0 0
        %526 = vmatpush1.bf16.msra.mxu0 0
        %527 = vmatprep.mubr.bf16.mxu0 0
        %528 = vmatmul.mubr.bf16.gmra.mrb[0].mxu0 %v487
        %v529 = vpop.f32.mrb[0].mxu0
        %v530 = vadd.f32 0.0, %v529
        %v531 = vpop.f32.mrb[0].mxu0
        %v532 = vadd.f32 0.0, %v531
        %v533 = vpop.f32.mrb[0].mxu0
        %v534 = vpop.f32.mrb[0].mxu0
        %535 = vdwg.mxu0
        %v536 = vadd.f32 %v460, %v530
        %v537 = vadd.f32 %v461, %v532
        %v538 = vpack.c.bf16 %v231, %v231
        %v539 = vpack.c.bf16 %v233, %v233
        %v541 = vsel %vm284, %v205, 0
        %v544 = vsel %vm288, %v538, 0
        %v547 = vsel %vm288, %v539, 0
        %549 = vmatprep.subr.bf16.mxu0 %v547
        %550 = vmatpush1.bf16.msra.mxu0 %v544
        %551 = vmatprep.subr.bf16.mxu0 0
        %552 = vmatpush1.bf16.msra.mxu0 0
        %553 = vmatprep.subr.bf16.mxu0 0
        %554 = vmatpush1.bf16.msra.mxu0 0
        %555 = vmatprep.subr.bf16.mxu0 0
        %556 = vmatpush1.bf16.msra.mxu0 0
        %557 = vmatprep.subr.bf16.mxu0 0
        %558 = vmatpush1.bf16.msra.mxu0 0
        %559 = vmatprep.subr.bf16.mxu0 0
        %560 = vmatpush1.bf16.msra.mxu0 0
        %561 = vmatprep.subr.bf16.mxu0 0
        %562 = vmatpush1.bf16.msra.mxu0 0
        %563 = vmatprep.subr.bf16.mxu0 0
        %564 = vmatpush1.bf16.msra.mxu0 0
        %565 = vmatprep.subr.bf16.mxu0 0
        %566 = vmatpush1.bf16.msra.mxu0 0
        %567 = vmatprep.subr.bf16.mxu0 0
        %568 = vmatpush1.bf16.msra.mxu0 0
        %569 = vmatprep.subr.bf16.mxu0 0
        %570 = vmatpush1.bf16.msra.mxu0 0
        %571 = vmatprep.subr.bf16.mxu0 0
        %572 = vmatpush1.bf16.msra.mxu0 0
        %573 = vmatprep.subr.bf16.mxu0 0
        %574 = vmatpush1.bf16.msra.mxu0 0
        %575 = vmatprep.subr.bf16.mxu0 0
        %576 = vmatpush1.bf16.msra.mxu0 0
        %577 = vmatprep.subr.bf16.mxu0 0
        %578 = vmatpush1.bf16.msra.mxu0 0
        %579 = vmatprep.subr.bf16.mxu0 0
        %580 = vmatpush1.bf16.msra.mxu0 0
        %581 = vmatprep.mubr.bf16.mxu0 0
        %582 = vmatmul.mubr.bf16.gmra.mrb[0].mxu0 %v541
        %v583 = vpop.f32.mrb[0].mxu0
        %v584 = vadd.f32 0.0, %v583
        %v585 = vpop.f32.mrb[0].mxu0
        %v586 = vadd.f32 0.0, %v585
        %v587 = vpop.f32.mrb[0].mxu0
        %v588 = vpop.f32.mrb[0].mxu0
        %589 = vdwg.mxu0
        %v590 = vadd.f32 %v536, %v584
        %v591 = vadd.f32 %v537, %v586
        %592 = vrot.lane.b32.xlu0 %v231, 127
        %v593 = vpop.permute.xlu0 %592
        %594 = vrot.lane.b32.xlu0 %v233, 127
        %v595 = vpop.permute.xlu0 %594
        %vm596 = vcmp.lt.s32.totalorder %v240, 127
        %v597 = vsel %vm596, %v593, %v595
        %v598 = vsel %vm596, %v595, %v593
        %s599 = scalar_lea.vmem %s1, 5
        %v600 = vld [vmem:[%s599] ss:$8 sm:$0x3]
        %v602 = vlaneseq
        %v603 = vshrl.u32 %v602, 7
        %v604 = vsub.s32 0, %v603
        %v605 = vrot.slane %v600, %v604
        %v606 = vlaneseq
        %v607 = vshrl.u32 %v606, 7
        %v608 = vsub.s32 1, %v607
        %v609 = vrot.slane %v600, %v608
        %v612 = vmul.f32 %v597, %v605
        %v613 = vmul.f32 %v598, %v609
        %v614 = vpack.c.bf16 %v612, %v612
        %v615 = vpack.c.bf16 %v613, %v613
        %v617 = vsel %vm284, %v207, 0
        %v620 = vsel %vm288, %v614, 0
        %v623 = vsel %vm288, %v615, 0
        %625 = vmatprep.subr.bf16.mxu0 %v623
        %626 = vmatpush1.bf16.msra.mxu0 %v620
        %627 = vmatprep.subr.bf16.mxu0 0
        %628 = vmatpush1.bf16.msra.mxu0 0
        %629 = vmatprep.subr.bf16.mxu0 0
        %630 = vmatpush1.bf16.msra.mxu0 0
        %631 = vmatprep.subr.bf16.mxu0 0
        %632 = vmatpush1.bf16.msra.mxu0 0
        %633 = vmatprep.subr.bf16.mxu0 0
        %634 = vmatpush1.bf16.msra.mxu0 0
        %635 = vmatprep.subr.bf16.mxu0 0
        %636 = vmatpush1.bf16.msra.mxu0 0
        %637 = vmatprep.subr.bf16.mxu0 0
        %638 = vmatpush1.bf16.msra.mxu0 0
        %639 = vmatprep.subr.bf16.mxu0 0
        %640 = vmatpush1.bf16.msra.mxu0 0
        %641 = vmatprep.subr.bf16.mxu0 0
        %642 = vmatpush1.bf16.msra.mxu0 0
        %643 = vmatprep.subr.bf16.mxu0 0
        %644 = vmatpush1.bf16.msra.mxu0 0
        %645 = vmatprep.subr.bf16.mxu0 0
        %646 = vmatpush1.bf16.msra.mxu0 0
        %647 = vmatprep.subr.bf16.mxu0 0
        %648 = vmatpush1.bf16.msra.mxu0 0
        %649 = vmatprep.subr.bf16.mxu0 0
        %650 = vmatpush1.bf16.msra.mxu0 0
        %651 = vmatprep.subr.bf16.mxu0 0
        %652 = vmatpush1.bf16.msra.mxu0 0
        %653 = vmatprep.subr.bf16.mxu0 0
        %654 = vmatpush1.bf16.msra.mxu0 0
        %655 = vmatprep.subr.bf16.mxu0 0
        %656 = vmatpush1.bf16.msra.mxu0 0
        %657 = vmatprep.mubr.bf16.mxu0 0
        %658 = vmatmul.mubr.bf16.gmra.mrb[0].mxu0 %v617
        %v659 = vpop.f32.mrb[0].mxu0
        %v660 = vadd.f32 0.0, %v659
        %v661 = vpop.f32.mrb[0].mxu0
        %v662 = vadd.f32 0.0, %v661
        %v663 = vpop.f32.mrb[0].mxu0
        %v664 = vpop.f32.mrb[0].mxu0
        %665 = vdwg.mxu0
        %v666 = vadd.f32 %v590, %v660
        %v667 = vadd.f32 %v591, %v662
        %668 = vrot.lane.b32.xlu0 %v231, 113
        %v669 = vpop.permute.xlu0 %668
        %670 = vrot.lane.b32.xlu0 %v233, 113
        %v671 = vpop.permute.xlu0 %670
        %vm672 = vcmp.lt.s32.totalorder %v240, 113
        %v673 = vsel %vm672, %v669, %v671
        %v674 = vsel %vm672, %v671, %v669
        %s675 = scalar_lea.vmem %s1, 6
        %v676 = vld [vmem:[%s675] ss:$8 sm:$0x3]
        %v678 = vlaneseq
        %v679 = vshrl.u32 %v678, 7
        %v680 = vsub.s32 0, %v679
        %v681 = vrot.slane %v676, %v680
        %v682 = vlaneseq
        %v683 = vshrl.u32 %v682, 7
        %v684 = vsub.s32 1, %v683
        %v685 = vrot.slane %v676, %v684
        %v688 = vmul.f32 %v673, %v681
        %v689 = vmul.f32 %v674, %v685
        %v690 = vpack.c.bf16 %v688, %v688
        %v691 = vpack.c.bf16 %v689, %v689
        %v693 = vsel %vm284, %v209, 0
        %v696 = vsel %vm288, %v690, 0
        %v699 = vsel %vm288, %v691, 0
        %701 = vmatprep.subr.bf16.mxu0 %v699
        %702 = vmatpush1.bf16.msra.mxu0 %v696
        %703 = vmatprep.subr.bf16.mxu0 0
        %704 = vmatpush1.bf16.msra.mxu0 0
        %705 = vmatprep.subr.bf16.mxu0 0
        %706 = vmatpush1.bf16.msra.mxu0 0
        %707 = vmatprep.subr.bf16.mxu0 0
        %708 = vmatpush1.bf16.msra.mxu0 0
        %709 = vmatprep.subr.bf16.mxu0 0
        %710 = vmatpush1.bf16.msra.mxu0 0
        %711 = vmatprep.subr.bf16.mxu0 0
        %712 = vmatpush1.bf16.msra.mxu0 0
        %713 = vmatprep.subr.bf16.mxu0 0
        %714 = vmatpush1.bf16.msra.mxu0 0
        %715 = vmatprep.subr.bf16.mxu0 0
        %716 = vmatpush1.bf16.msra.mxu0 0
        %717 = vmatprep.subr.bf16.mxu0 0
        %718 = vmatpush1.bf16.msra.mxu0 0
        %719 = vmatprep.subr.bf16.mxu0 0
        %720 = vmatpush1.bf16.msra.mxu0 0
        %721 = vmatprep.subr.bf16.mxu0 0
        %722 = vmatpush1.bf16.msra.mxu0 0
        %723 = vmatprep.subr.bf16.mxu0 0
        %724 = vmatpush1.bf16.msra.mxu0 0
        %725 = vmatprep.subr.bf16.mxu0 0
        %726 = vmatpush1.bf16.msra.mxu0 0
        %727 = vmatprep.subr.bf16.mxu0 0
        %728 = vmatpush1.bf16.msra.mxu0 0
        %729 = vmatprep.subr.bf16.mxu0 0
        %730 = vmatpush1.bf16.msra.mxu0 0
        %731 = vmatprep.subr.bf16.mxu0 0
        %732 = vmatpush1.bf16.msra.mxu0 0
        %733 = vmatprep.mubr.bf16.mxu0 0
        %734 = vmatmul.mubr.bf16.gmra.mrb[0].mxu0 %v693
        %v735 = vpop.f32.mrb[0].mxu0
        %v736 = vadd.f32 0.0, %v735
        %v737 = vpop.f32.mrb[0].mxu0
        %v738 = vadd.f32 0.0, %v737
        %v739 = vpop.f32.mrb[0].mxu0
        %v740 = vpop.f32.mrb[0].mxu0
        %741 = vdwg.mxu0
        %v742 = vadd.f32 %v666, %v736
        %v743 = vadd.f32 %v667, %v738
        %744 = vrot.lane.b32.xlu0 %v231, 112
        %v745 = vpop.permute.xlu0 %744
        %746 = vrot.lane.b32.xlu0 %v233, 112
        %v747 = vpop.permute.xlu0 %746
        %vm748 = vcmp.lt.s32.totalorder %v240, 112
        %v749 = vsel %vm748, %v745, %v747
        %v750 = vsel %vm748, %v747, %v745
        %s751 = scalar_lea.vmem %s1, 7
        %v752 = vld [vmem:[%s751] ss:$8 sm:$0x3]
        %v754 = vlaneseq
        %v755 = vshrl.u32 %v754, 7
        %v756 = vsub.s32 0, %v755
        %v757 = vrot.slane %v752, %v756
        %v758 = vlaneseq
        %v759 = vshrl.u32 %v758, 7
        %v760 = vsub.s32 1, %v759
        %v761 = vrot.slane %v752, %v760
        %v764 = vmul.f32 %v749, %v757
        %v765 = vmul.f32 %v750, %v761
        %v766 = vpack.c.bf16 %v764, %v764
        %v767 = vpack.c.bf16 %v765, %v765
        %v769 = vsel %vm284, %v211, 0
        %v772 = vsel %vm288, %v766, 0
        %v775 = vsel %vm288, %v767, 0
        %777 = vmatprep.subr.bf16.mxu0 %v775
        %778 = vmatpush1.bf16.msra.mxu0 %v772
        %779 = vmatprep.subr.bf16.mxu0 0
        %780 = vmatpush1.bf16.msra.mxu0 0
        %781 = vmatprep.subr.bf16.mxu0 0
        %782 = vmatpush1.bf16.msra.mxu0 0
        %783 = vmatprep.subr.bf16.mxu0 0
        %784 = vmatpush1.bf16.msra.mxu0 0
        %785 = vmatprep.subr.bf16.mxu0 0
        %786 = vmatpush1.bf16.msra.mxu0 0
        %787 = vmatprep.subr.bf16.mxu0 0
        %788 = vmatpush1.bf16.msra.mxu0 0
        %789 = vmatprep.subr.bf16.mxu0 0
        %790 = vmatpush1.bf16.msra.mxu0 0
        %791 = vmatprep.subr.bf16.mxu0 0
        %792 = vmatpush1.bf16.msra.mxu0 0
        %793 = vmatprep.subr.bf16.mxu0 0
        %794 = vmatpush1.bf16.msra.mxu0 0
        %795 = vmatprep.subr.bf16.mxu0 0
        %796 = vmatpush1.bf16.msra.mxu0 0
        %797 = vmatprep.subr.bf16.mxu0 0
        %798 = vmatpush1.bf16.msra.mxu0 0
        %799 = vmatprep.subr.bf16.mxu0 0
        %800 = vmatpush1.bf16.msra.mxu0 0
        %801 = vmatprep.subr.bf16.mxu0 0
        %802 = vmatpush1.bf16.msra.mxu0 0
        %803 = vmatprep.subr.bf16.mxu0 0
        %804 = vmatpush1.bf16.msra.mxu0 0
        %805 = vmatprep.subr.bf16.mxu0 0
        %806 = vmatpush1.bf16.msra.mxu0 0
        %807 = vmatprep.subr.bf16.mxu0 0
        %808 = vmatpush1.bf16.msra.mxu0 0
        %809 = vmatprep.mubr.bf16.mxu0 0
        %810 = vmatmul.mubr.bf16.gmra.mrb[0].mxu0 %v769
        %v811 = vpop.f32.mrb[0].mxu0
        %v812 = vadd.f32 0.0, %v811
        %v813 = vpop.f32.mrb[0].mxu0
        %v814 = vadd.f32 0.0, %v813
        %v815 = vpop.f32.mrb[0].mxu0
        %v816 = vpop.f32.mrb[0].mxu0
        %817 = vdwg.mxu0
        %v818 = vadd.f32 %v742, %v812
        %v819 = vadd.f32 %v743, %v814
        %820 = vrot.lane.b32.xlu0 %v231, 111
        %v821 = vpop.permute.xlu0 %820
        %822 = vrot.lane.b32.xlu0 %v233, 111
        %v823 = vpop.permute.xlu0 %822
        %vm824 = vcmp.lt.s32.totalorder %v240, 111
        %v825 = vsel %vm824, %v821, %v823
        %v826 = vsel %vm824, %v823, %v821
        %s827 = scalar_lea.vmem %s1, 16
        %v828 = vld [vmem:[%s827] ss:$8 sm:$0x3]
        %v830 = vlaneseq
        %v831 = vshrl.u32 %v830, 7
        %v832 = vsub.s32 0, %v831
        %v833 = vrot.slane %v828, %v832
        %v834 = vlaneseq
        %v835 = vshrl.u32 %v834, 7
        %v836 = vsub.s32 1, %v835
        %v837 = vrot.slane %v828, %v836
        %v840 = vmul.f32 %v825, %v833
        %v841 = vmul.f32 %v826, %v837
        %v842 = vpack.c.bf16 %v840, %v840
        %v843 = vpack.c.bf16 %v841, %v841
        %v845 = vsel %vm284, %v213, 0
        %v848 = vsel %vm288, %v842, 0
        %v851 = vsel %vm288, %v843, 0
        %853 = vmatprep.subr.bf16.mxu0 %v851
        %854 = vmatpush1.bf16.msra.mxu0 %v848
        %855 = vmatprep.subr.bf16.mxu0 0
        %856 = vmatpush1.bf16.msra.mxu0 0
        %857 = vmatprep.subr.bf16.mxu0 0
        %858 = vmatpush1.bf16.msra.mxu0 0
        %859 = vmatprep.subr.bf16.mxu0 0
        %860 = vmatpush1.bf16.msra.mxu0 0
        %861 = vmatprep.subr.bf16.mxu0 0
        %862 = vmatpush1.bf16.msra.mxu0 0
        %863 = vmatprep.subr.bf16.mxu0 0
        %864 = vmatpush1.bf16.msra.mxu0 0
        %865 = vmatprep.subr.bf16.mxu0 0
        %866 = vmatpush1.bf16.msra.mxu0 0
        %867 = vmatprep.subr.bf16.mxu0 0
        %868 = vmatpush1.bf16.msra.mxu0 0
        %869 = vmatprep.subr.bf16.mxu0 0
        %870 = vmatpush1.bf16.msra.mxu0 0
        %871 = vmatprep.subr.bf16.mxu0 0
        %872 = vmatpush1.bf16.msra.mxu0 0
        %873 = vmatprep.subr.bf16.mxu0 0
        %874 = vmatpush1.bf16.msra.mxu0 0
        %875 = vmatprep.subr.bf16.mxu0 0
        %876 = vmatpush1.bf16.msra.mxu0 0
        %877 = vmatprep.subr.bf16.mxu0 0
        %878 = vmatpush1.bf16.msra.mxu0 0
        %879 = vmatprep.subr.bf16.mxu0 0
        %880 = vmatpush1.bf16.msra.mxu0 0
        %881 = vmatprep.subr.bf16.mxu0 0
        %882 = vmatpush1.bf16.msra.mxu0 0
        %883 = vmatprep.subr.bf16.mxu0 0
        %884 = vmatpush1.bf16.msra.mxu0 0
        %885 = vmatprep.mubr.bf16.mxu0 0
        %886 = vmatmul.mubr.bf16.gmra.mrb[0].mxu0 %v845
        %v887 = vpop.f32.mrb[0].mxu0
        %v888 = vadd.f32 0.0, %v887
        %v889 = vpop.f32.mrb[0].mxu0
        %v890 = vadd.f32 0.0, %v889
        %v891 = vpop.f32.mrb[0].mxu0
        %v892 = vpop.f32.mrb[0].mxu0
        %893 = vdwg.mxu0
        %v894 = vadd.f32 %v818, %v888
        %v895 = vadd.f32 %v819, %v890
        %vm896 = vcmask 1043456
        %v897 = vsel %vm896, %v894, 0.0
        %v898 = vsel %vm896, %v895, 0.0
        %v899 = vadd.f32 %v897, %v898
        %900 = vadd.xlane.f32.xlu0 %v899
        %v901 = vpop.xlane.xlu0 %900
        %v902 = vmul.f32 %v901, 0.00390625
        %v903 = vsub.f32 %v894, %v902
        %v904 = vsub.f32 %v895, %v902
        %v905 = vmul.f32 %v903, %v903
        %v906 = vmul.f32 %v904, %v904
        %v907 = vsel %vm896, %v905, 0.0
        %v908 = vsel %vm896, %v906, 0.0
        %v909 = vadd.f32 %v907, %v908
        %910 = vadd.xlane.f32.xlu0 %v909
        %v911 = vpop.xlane.xlu0 %910
        %v912 = vmul.f32 %v911, 0.00390625
        %v913 = vadd.f32 %v912, 1e-05
        %v914 = vrsqrt.pop %v913
        %v915 = vmul.f32 %v903, %v914
        %v916 = vmul.f32 %v904, %v914
        %v917 = vmax.f32 %v915, 0.0
        %v918 = vmax.f32 %v916, 0.0
        %919 = vrot.lane.b32.xlu0 %v917, 17
        %v920 = vpop.permute.xlu0 %919
        %921 = vrot.lane.b32.xlu0 %v918, 17
        %v922 = vpop.permute.xlu0 %921
        %v923 = vsel %vm241, %v920, %v922
        %v924 = vsel %vm241, %v922, %v920
        %v925 = vmul.f32 %v924, %v249
        %v926 = vmul.f32 %v923, %v253
        %v927 = vpack.c.bf16 %v925, %v925
        %v928 = vpack.c.bf16 %v926, %v926
        %929 = vrot.lane.b32.xlu0 %v917, 16
        %v930 = vpop.permute.xlu0 %929
        %931 = vrot.lane.b32.xlu0 %v918, 16
        %v932 = vpop.permute.xlu0 %931
        %v933 = vsel %vm264, %v930, %v932
        %v934 = vsel %vm264, %v932, %v930
        %v935 = vmul.f32 %v934, %v273
        %v936 = vmul.f32 %v933, %v277
        %v937 = vpack.c.bf16 %v935, %v935
        %v938 = vpack.c.bf16 %v936, %v936
        %v940 = vsel %vm284, %v216, 0
        %v943 = vsel %vm288, %v937, 0
        %v946 = vsel %vm288, %v938, 0
        %948 = vmatprep.subr.bf16.mxu0 %v946
        %949 = vmatpush1.bf16.msra.mxu0 %v943
        %950 = vmatprep.subr.bf16.mxu0 0
        %951 = vmatpush1.bf16.msra.mxu0 0
        %952 = vmatprep.subr.bf16.mxu0 0
        %953 = vmatpush1.bf16.msra.mxu0 0
        %954 = vmatprep.subr.bf16.mxu0 0
        %955 = vmatpush1.bf16.msra.mxu0 0
        %956 = vmatprep.subr.bf16.mxu0 0
        %957 = vmatpush1.bf16.msra.mxu0 0
        %958 = vmatprep.subr.bf16.mxu0 0
        %959 = vmatpush1.bf16.msra.mxu0 0
        %960 = vmatprep.subr.bf16.mxu0 0
        %961 = vmatpush1.bf16.msra.mxu0 0
        %962 = vmatprep.subr.bf16.mxu0 0
        %963 = vmatpush1.bf16.msra.mxu0 0
        %964 = vmatprep.subr.bf16.mxu0 0
        %965 = vmatpush1.bf16.msra.mxu0 0
        %966 = vmatprep.subr.bf16.mxu0 0
        %967 = vmatpush1.bf16.msra.mxu0 0
        %968 = vmatprep.subr.bf16.mxu0 0
        %969 = vmatpush1.bf16.msra.mxu0 0
        %970 = vmatprep.subr.bf16.mxu0 0
        %971 = vmatpush1.bf16.msra.mxu0 0
        %972 = vmatprep.subr.bf16.mxu0 0
        %973 = vmatpush1.bf16.msra.mxu0 0
        %974 = vmatprep.subr.bf16.mxu0 0
        %975 = vmatpush1.bf16.msra.mxu0 0
        %976 = vmatprep.subr.bf16.mxu0 0
        %977 = vmatpush1.bf16.msra.mxu0 0
        %978 = vmatprep.subr.bf16.mxu0 0
        %979 = vmatpush1.bf16.msra.mxu0 0
        %980 = vmatprep.mubr.bf16.mxu0 0
        %981 = vmatmul.mubr.bf16.gmra.mrb[0].mxu0 %v940
        %v982 = vpop.f32.mrb[0].mxu0
        %v983 = vadd.f32 0.0, %v982
        %v984 = vpop.f32.mrb[0].mxu0
        %v985 = vadd.f32 0.0, %v984
        %v986 = vpop.f32.mrb[0].mxu0
        %v987 = vpop.f32.mrb[0].mxu0
        %988 = vdwg.mxu0
        %v990 = vsel %vm284, %v214, 0
        %v993 = vsel %vm288, %v927, 0
        %v996 = vsel %vm288, %v928, 0
        %998 = vmatprep.subr.bf16.mxu0 %v996
        %999 = vmatpush1.bf16.msra.mxu0 %v993
        %1000 = vmatprep.subr.bf16.mxu0 0
        %1001 = vmatpush1.bf16.msra.mxu0 0
        %1002 = vmatprep.subr.bf16.mxu0 0
        %1003 = vmatpush1.bf16.msra.mxu0 0
        %1004 = vmatprep.subr.bf16.mxu0 0
        %1005 = vmatpush1.bf16.msra.mxu0 0
        %1006 = vmatprep.subr.bf16.mxu0 0
        %1007 = vmatpush1.bf16.msra.mxu0 0
        %1008 = vmatprep.subr.bf16.mxu0 0
        %1009 = vmatpush1.bf16.msra.mxu0 0
        %1010 = vmatprep.subr.bf16.mxu0 0
        %1011 = vmatpush1.bf16.msra.mxu0 0
        %1012 = vmatprep.subr.bf16.mxu0 0
        %1013 = vmatpush1.bf16.msra.mxu0 0
        %1014 = vmatprep.subr.bf16.mxu0 0
        %1015 = vmatpush1.bf16.msra.mxu0 0
        %1016 = vmatprep.subr.bf16.mxu0 0
        %1017 = vmatpush1.bf16.msra.mxu0 0
        %1018 = vmatprep.subr.bf16.mxu0 0
        %1019 = vmatpush1.bf16.msra.mxu0 0
        %1020 = vmatprep.subr.bf16.mxu0 0
        %1021 = vmatpush1.bf16.msra.mxu0 0
        %1022 = vmatprep.subr.bf16.mxu0 0
        %1023 = vmatpush1.bf16.msra.mxu0 0
        %1024 = vmatprep.subr.bf16.mxu0 0
        %1025 = vmatpush1.bf16.msra.mxu0 0
        %1026 = vmatprep.subr.bf16.mxu0 0
        %1027 = vmatpush1.bf16.msra.mxu0 0
        %1028 = vmatprep.subr.bf16.mxu0 0
        %1029 = vmatpush1.bf16.msra.mxu0 0
        %1030 = vmatprep.mubr.bf16.mxu0 0
        %1031 = vmatmul.mubr.bf16.gmra.mrb[0].mxu0 %v990
        %v1032 = vpop.f32.mrb[0].mxu0
        %v1033 = vadd.f32 %v983, %v1032
        %v1034 = vpop.f32.mrb[0].mxu0
        %v1035 = vadd.f32 %v985, %v1034
        %v1036 = vpop.f32.mrb[0].mxu0
        %v1037 = vpop.f32.mrb[0].mxu0
        %1038 = vdwg.mxu0
        %1039 = vrot.lane.b32.xlu0 %v917, 15
        %v1040 = vpop.permute.xlu0 %1039
        %1041 = vrot.lane.b32.xlu0 %v918, 15
        %v1042 = vpop.permute.xlu0 %1041
        %v1043 = vsel %vm390, %v1040, %v1042
        %v1044 = vsel %vm390, %v1042, %v1040
        %v1045 = vmul.f32 %v1044, %v399
        %v1046 = vmul.f32 %v1043, %v403
        %v1047 = vpack.c.bf16 %v1045, %v1045
        %v1048 = vpack.c.bf16 %v1046, %v1046
        %v1050 = vsel %vm284, %v218, 0
        %v1053 = vsel %vm288, %v1047, 0
        %v1056 = vsel %vm288, %v1048, 0
        %1058 = vmatprep.subr.bf16.mxu0 %v1056
        %1059 = vmatpush1.bf16.msra.mxu0 %v1053
        %1060 = vmatprep.subr.bf16.mxu0 0
        %1061 = vmatpush1.bf16.msra.mxu0 0
        %1062 = vmatprep.subr.bf16.mxu0 0
        %1063 = vmatpush1.bf16.msra.mxu0 0
        %1064 = vmatprep.subr.bf16.mxu0 0
        %1065 = vmatpush1.bf16.msra.mxu0 0
        %1066 = vmatprep.subr.bf16.mxu0 0
        %1067 = vmatpush1.bf16.msra.mxu0 0
        %1068 = vmatprep.subr.bf16.mxu0 0
        %1069 = vmatpush1.bf16.msra.mxu0 0
        %1070 = vmatprep.subr.bf16.mxu0 0
        %1071 = vmatpush1.bf16.msra.mxu0 0
        %1072 = vmatprep.subr.bf16.mxu0 0
        %1073 = vmatpush1.bf16.msra.mxu0 0
        %1074 = vmatprep.subr.bf16.mxu0 0
        %1075 = vmatpush1.bf16.msra.mxu0 0
        %1076 = vmatprep.subr.bf16.mxu0 0
        %1077 = vmatpush1.bf16.msra.mxu0 0
        %1078 = vmatprep.subr.bf16.mxu0 0
        %1079 = vmatpush1.bf16.msra.mxu0 0
        %1080 = vmatprep.subr.bf16.mxu0 0
        %1081 = vmatpush1.bf16.msra.mxu0 0
        %1082 = vmatprep.subr.bf16.mxu0 0
        %1083 = vmatpush1.bf16.msra.mxu0 0
        %1084 = vmatprep.subr.bf16.mxu0 0
        %1085 = vmatpush1.bf16.msra.mxu0 0
        %1086 = vmatprep.subr.bf16.mxu0 0
        %1087 = vmatpush1.bf16.msra.mxu0 0
        %1088 = vmatprep.subr.bf16.mxu0 0
        %1089 = vmatpush1.bf16.msra.mxu0 0
        %1090 = vmatprep.mubr.bf16.mxu0 0
        %1091 = vmatmul.mubr.bf16.gmra.mrb[0].mxu0 %v1050
        %v1092 = vpop.f32.mrb[0].mxu0
        %v1093 = vadd.f32 0.0, %v1092
        %v1094 = vpop.f32.mrb[0].mxu0
        %v1095 = vadd.f32 0.0, %v1094
        %v1096 = vpop.f32.mrb[0].mxu0
        %v1097 = vpop.f32.mrb[0].mxu0
        %1098 = vdwg.mxu0
        %v1099 = vadd.f32 %v1033, %v1093
        %v1100 = vadd.f32 %v1035, %v1095
        %1101 = vrot.lane.b32.xlu0 %v917, 1
        %v1102 = vpop.permute.xlu0 %1101
        %1103 = vrot.lane.b32.xlu0 %v918, 1
        %v1104 = vpop.permute.xlu0 %1103
        %v1105 = vsel %vm466, %v1102, %v1104
        %v1106 = vsel %vm466, %v1104, %v1102
        %v1107 = vmul.f32 %v1106, %v475
        %v1108 = vmul.f32 %v1105, %v479
        %v1109 = vpack.c.bf16 %v1107, %v1107
        %v1110 = vpack.c.bf16 %v1108, %v1108
        %v1112 = vsel %vm284, %v220, 0
        %v1115 = vsel %vm288, %v1109, 0
        %v1118 = vsel %vm288, %v1110, 0
        %1120 = vmatprep.subr.bf16.mxu0 %v1118
        %1121 = vmatpush1.bf16.msra.mxu0 %v1115
        %1122 = vmatprep.subr.bf16.mxu0 0
        %1123 = vmatpush1.bf16.msra.mxu0 0
        %1124 = vmatprep.subr.bf16.mxu0 0
        %1125 = vmatpush1.bf16.msra.mxu0 0
        %1126 = vmatprep.subr.bf16.mxu0 0
        %1127 = vmatpush1.bf16.msra.mxu0 0
        %1128 = vmatprep.subr.bf16.mxu0 0
        %1129 = vmatpush1.bf16.msra.mxu0 0
        %1130 = vmatprep.subr.bf16.mxu0 0
        %1131 = vmatpush1.bf16.msra.mxu0 0
        %1132 = vmatprep.subr.bf16.mxu0 0
        %1133 = vmatpush1.bf16.msra.mxu0 0
        %1134 = vmatprep.subr.bf16.mxu0 0
        %1135 = vmatpush1.bf16.msra.mxu0 0
        %1136 = vmatprep.subr.bf16.mxu0 0
        %1137 = vmatpush1.bf16.msra.mxu0 0
        %1138 = vmatprep.subr.bf16.mxu0 0
        %1139 = vmatpush1.bf16.msra.mxu0 0
        %1140 = vmatprep.subr.bf16.mxu0 0
        %1141 = vmatpush1.bf16.msra.mxu0 0
        %1142 = vmatprep.subr.bf16.mxu0 0
        %1143 = vmatpush1.bf16.msra.mxu0 0
        %1144 = vmatprep.subr.bf16.mxu0 0
        %1145 = vmatpush1.bf16.msra.mxu0 0
        %1146 = vmatprep.subr.bf16.mxu0 0
        %1147 = vmatpush1.bf16.msra.mxu0 0
        %1148 = vmatprep.subr.bf16.mxu0 0
        %1149 = vmatpush1.bf16.msra.mxu0 0
        %1150 = vmatprep.subr.bf16.mxu0 0
        %1151 = vmatpush1.bf16.msra.mxu0 0
        %1152 = vmatprep.mubr.bf16.mxu0 0
        %1153 = vmatmul.mubr.bf16.gmra.mrb[0].mxu0 %v1112
        %v1154 = vpop.f32.mrb[0].mxu0
        %v1155 = vadd.f32 0.0, %v1154
        %v1156 = vpop.f32.mrb[0].mxu0
        %v1157 = vadd.f32 0.0, %v1156
        %v1158 = vpop.f32.mrb[0].mxu0
        %v1159 = vpop.f32.mrb[0].mxu0
        %1160 = vdwg.mxu0
        %v1161 = vadd.f32 %v1099, %v1155
        %v1162 = vadd.f32 %v1100, %v1157
        %v1163 = vpack.c.bf16 %v917, %v917
        %v1164 = vpack.c.bf16 %v918, %v918
        %v1166 = vsel %vm284, %v222, 0
        %v1169 = vsel %vm288, %v1163, 0
        %v1172 = vsel %vm288, %v1164, 0
        %1174 = vmatprep.subr.bf16.mxu0 %v1172
        %1175 = vmatpush1.bf16.msra.mxu0 %v1169
        %1176 = vmatprep.subr.bf16.mxu0 0
        %1177 = vmatpush1.bf16.msra.mxu0 0
        %1178 = vmatprep.subr.bf16.mxu0 0
        %1179 = vmatpush1.bf16.msra.mxu0 0
        %1180 = vmatprep.subr.bf16.mxu0 0
        %1181 = vmatpush1.bf16.msra.mxu0 0
        %1182 = vmatprep.subr.bf16.mxu0 0
        %1183 = vmatpush1.bf16.msra.mxu0 0
        %1184 = vmatprep.subr.bf16.mxu0 0
        %1185 = vmatpush1.bf16.msra.mxu0 0
        %1186 = vmatprep.subr.bf16.mxu0 0
        %1187 = vmatpush1.bf16.msra.mxu0 0
        %1188 = vmatprep.subr.bf16.mxu0 0
        %1189 = vmatpush1.bf16.msra.mxu0 0
        %1190 = vmatprep.subr.bf16.mxu0 0
        %1191 = vmatpush1.bf16.msra.mxu0 0
        %1192 = vmatprep.subr.bf16.mxu0 0
        %1193 = vmatpush1.bf16.msra.mxu0 0
        %1194 = vmatprep.subr.bf16.mxu0 0
        %1195 = vmatpush1.bf16.msra.mxu0 0
        %1196 = vmatprep.subr.bf16.mxu0 0
        %1197 = vmatpush1.bf16.msra.mxu0 0
        %1198 = vmatprep.subr.bf16.mxu0 0
        %1199 = vmatpush1.bf16.msra.mxu0 0
        %1200 = vmatprep.subr.bf16.mxu0 0
        %1201 = vmatpush1.bf16.msra.mxu0 0
        %1202 = vmatprep.subr.bf16.mxu0 0
        %1203 = vmatpush1.bf16.msra.mxu0 0
        %1204 = vmatprep.subr.bf16.mxu0 0
        %1205 = vmatpush1.bf16.msra.mxu0 0
        %1206 = vmatprep.mubr.bf16.mxu0 0
        %1207 = vmatmul.mubr.bf16.gmra.mrb[0].mxu0 %v1166
        %v1208 = vpop.f32.mrb[0].mxu0
        %v1209 = vadd.f32 0.0, %v1208
        %v1210 = vpop.f32.mrb[0].mxu0
        %v1211 = vadd.f32 0.0, %v1210
        %v1212 = vpop.f32.mrb[0].mxu0
        %v1213 = vpop.f32.mrb[0].mxu0
        %1214 = vdwg.mxu0
        %v1215 = vadd.f32 %v1161, %v1209
        %v1216 = vadd.f32 %v1162, %v1211
        %1217 = vrot.lane.b32.xlu0 %v917, 127
        %v1218 = vpop.permute.xlu0 %1217
        %1219 = vrot.lane.b32.xlu0 %v918, 127
        %v1220 = vpop.permute.xlu0 %1219
        %v1221 = vsel %vm596, %v1218, %v1220
        %v1222 = vsel %vm596, %v1220, %v1218
        %v1223 = vmul.f32 %v1221, %v605
        %v1224 = vmul.f32 %v1222, %v609
        %v1225 = vpack.c.bf16 %v1223, %v1223
        %v1226 = vpack.c.bf16 %v1224, %v1224
        %v1228 = vsel %vm284, %v224, 0
        %v1231 = vsel %vm288, %v1225, 0
        %v1234 = vsel %vm288, %v1226, 0
        %1236 = vmatprep.subr.bf16.mxu0 %v1234
        %1237 = vmatpush1.bf16.msra.mxu0 %v1231
        %1238 = vmatprep.subr.bf16.mxu0 0
        %1239 = vmatpush1.bf16.msra.mxu0 0
        %1240 = vmatprep.subr.bf16.mxu0 0
        %1241 = vmatpush1.bf16.msra.mxu0 0
        %1242 = vmatprep.subr.bf16.mxu0 0
        %1243 = vmatpush1.bf16.msra.mxu0 0
        %1244 = vmatprep.subr.bf16.mxu0 0
        %1245 = vmatpush1.bf16.msra.mxu0 0
        %1246 = vmatprep.subr.bf16.mxu0 0
        %1247 = vmatpush1.bf16.msra.mxu0 0
        %1248 = vmatprep.subr.bf16.mxu0 0
        %1249 = vmatpush1.bf16.msra.mxu0 0
        %1250 = vmatprep.subr.bf16.mxu0 0
        %1251 = vmatpush1.bf16.msra.mxu0 0
        %1252 = vmatprep.subr.bf16.mxu0 0
        %1253 = vmatpush1.bf16.msra.mxu0 0
        %1254 = vmatprep.subr.bf16.mxu0 0
        %1255 = vmatpush1.bf16.msra.mxu0 0
        %1256 = vmatprep.subr.bf16.mxu0 0
        %1257 = vmatpush1.bf16.msra.mxu0 0
        %1258 = vmatprep.subr.bf16.mxu0 0
        %1259 = vmatpush1.bf16.msra.mxu0 0
        %1260 = vmatprep.subr.bf16.mxu0 0
        %1261 = vmatpush1.bf16.msra.mxu0 0
        %1262 = vmatprep.subr.bf16.mxu0 0
        %1263 = vmatpush1.bf16.msra.mxu0 0
        %1264 = vmatprep.subr.bf16.mxu0 0
        %1265 = vmatpush1.bf16.msra.mxu0 0
        %1266 = vmatprep.subr.bf16.mxu0 0
        %1267 = vmatpush1.bf16.msra.mxu0 0
        %1268 = vmatprep.mubr.bf16.mxu0 0
        %1269 = vmatmul.mubr.bf16.gmra.mrb[0].mxu0 %v1228
        %v1270 = vpop.f32.mrb[0].mxu0
        %v1271 = vadd.f32 0.0, %v1270
        %v1272 = vpop.f32.mrb[0].mxu0
        %v1273 = vadd.f32 0.0, %v1272
        %v1274 = vpop.f32.mrb[0].mxu0
        %v1275 = vpop.f32.mrb[0].mxu0
        %1276 = vdwg.mxu0
        %v1277 = vadd.f32 %v1215, %v1271
        %v1278 = vadd.f32 %v1216, %v1273
        %1279 = vrot.lane.b32.xlu0 %v917, 113
        %v1280 = vpop.permute.xlu0 %1279
        %1281 = vrot.lane.b32.xlu0 %v918, 113
        %v1282 = vpop.permute.xlu0 %1281
        %v1283 = vsel %vm672, %v1280, %v1282
        %v1284 = vsel %vm672, %v1282, %v1280
        %v1285 = vmul.f32 %v1283, %v681
        %v1286 = vmul.f32 %v1284, %v685
        %v1287 = vpack.c.bf16 %v1285, %v1285
        %v1288 = vpack.c.bf16 %v1286, %v1286
        %v1290 = vsel %vm284, %v226, 0
        %v1293 = vsel %vm288, %v1287, 0
        %v1296 = vsel %vm288, %v1288, 0
        %1298 = vmatprep.subr.bf16.mxu0 %v1296
        %1299 = vmatpush1.bf16.msra.mxu0 %v1293
        %1300 = vmatprep.subr.bf16.mxu0 0
        %1301 = vmatpush1.bf16.msra.mxu0 0
        %1302 = vmatprep.subr.bf16.mxu0 0
        %1303 = vmatpush1.bf16.msra.mxu0 0
        %1304 = vmatprep.subr.bf16.mxu0 0
        %1305 = vmatpush1.bf16.msra.mxu0 0
        %1306 = vmatprep.subr.bf16.mxu0 0
        %1307 = vmatpush1.bf16.msra.mxu0 0
        %1308 = vmatprep.subr.bf16.mxu0 0
        %1309 = vmatpush1.bf16.msra.mxu0 0
        %1310 = vmatprep.subr.bf16.mxu0 0
        %1311 = vmatpush1.bf16.msra.mxu0 0
        %1312 = vmatprep.subr.bf16.mxu0 0
        %1313 = vmatpush1.bf16.msra.mxu0 0
        %1314 = vmatprep.subr.bf16.mxu0 0
        %1315 = vmatpush1.bf16.msra.mxu0 0
        %1316 = vmatprep.subr.bf16.mxu0 0
        %1317 = vmatpush1.bf16.msra.mxu0 0
        %1318 = vmatprep.subr.bf16.mxu0 0
        %1319 = vmatpush1.bf16.msra.mxu0 0
        %1320 = vmatprep.subr.bf16.mxu0 0
        %1321 = vmatpush1.bf16.msra.mxu0 0
        %1322 = vmatprep.subr.bf16.mxu0 0
        %1323 = vmatpush1.bf16.msra.mxu0 0
        %1324 = vmatprep.subr.bf16.mxu0 0
        %1325 = vmatpush1.bf16.msra.mxu0 0
        %1326 = vmatprep.subr.bf16.mxu0 0
        %1327 = vmatpush1.bf16.msra.mxu0 0
        %1328 = vmatprep.subr.bf16.mxu0 0
        %1329 = vmatpush1.bf16.msra.mxu0 0
        %1330 = vmatprep.mubr.bf16.mxu0 0
        %1331 = vmatmul.mubr.bf16.gmra.mrb[0].mxu0 %v1290
        %v1332 = vpop.f32.mrb[0].mxu0
        %v1333 = vadd.f32 0.0, %v1332
        %v1334 = vpop.f32.mrb[0].mxu0
        %v1335 = vadd.f32 0.0, %v1334
        %v1336 = vpop.f32.mrb[0].mxu0
        %v1337 = vpop.f32.mrb[0].mxu0
        %1338 = vdwg.mxu0
        %v1339 = vadd.f32 %v1277, %v1333
        %v1340 = vadd.f32 %v1278, %v1335
        %1341 = vrot.lane.b32.xlu0 %v917, 112
        %v1342 = vpop.permute.xlu0 %1341
        %1343 = vrot.lane.b32.xlu0 %v918, 112
        %v1344 = vpop.permute.xlu0 %1343
        %v1345 = vsel %vm748, %v1342, %v1344
        %v1346 = vsel %vm748, %v1344, %v1342
        %v1347 = vmul.f32 %v1345, %v757
        %v1348 = vmul.f32 %v1346, %v761
        %v1349 = vpack.c.bf16 %v1347, %v1347
        %v1350 = vpack.c.bf16 %v1348, %v1348
        %v1352 = vsel %vm284, %v228, 0
        %v1355 = vsel %vm288, %v1349, 0
        %v1358 = vsel %vm288, %v1350, 0
        %1360 = vmatprep.subr.bf16.mxu0 %v1358
        %1361 = vmatpush1.bf16.msra.mxu0 %v1355
        %1362 = vmatprep.subr.bf16.mxu0 0
        %1363 = vmatpush1.bf16.msra.mxu0 0
        %1364 = vmatprep.subr.bf16.mxu0 0
        %1365 = vmatpush1.bf16.msra.mxu0 0
        %1366 = vmatprep.subr.bf16.mxu0 0
        %1367 = vmatpush1.bf16.msra.mxu0 0
        %1368 = vmatprep.subr.bf16.mxu0 0
        %1369 = vmatpush1.bf16.msra.mxu0 0
        %1370 = vmatprep.subr.bf16.mxu0 0
        %1371 = vmatpush1.bf16.msra.mxu0 0
        %1372 = vmatprep.subr.bf16.mxu0 0
        %1373 = vmatpush1.bf16.msra.mxu0 0
        %1374 = vmatprep.subr.bf16.mxu0 0
        %1375 = vmatpush1.bf16.msra.mxu0 0
        %1376 = vmatprep.subr.bf16.mxu0 0
        %1377 = vmatpush1.bf16.msra.mxu0 0
        %1378 = vmatprep.subr.bf16.mxu0 0
        %1379 = vmatpush1.bf16.msra.mxu0 0
        %1380 = vmatprep.subr.bf16.mxu0 0
        %1381 = vmatpush1.bf16.msra.mxu0 0
        %1382 = vmatprep.subr.bf16.mxu0 0
        %1383 = vmatpush1.bf16.msra.mxu0 0
        %1384 = vmatprep.subr.bf16.mxu0 0
        %1385 = vmatpush1.bf16.msra.mxu0 0
        %1386 = vmatprep.subr.bf16.mxu0 0
        %1387 = vmatpush1.bf16.msra.mxu0 0
        %1388 = vmatprep.subr.bf16.mxu0 0
        %1389 = vmatpush1.bf16.msra.mxu0 0
        %1390 = vmatprep.subr.bf16.mxu0 0
        %1391 = vmatpush1.bf16.msra.mxu0 0
        %1392 = vmatprep.mubr.bf16.mxu0 0
        %1393 = vmatmul.mubr.bf16.gmra.mrb[0].mxu0 %v1352
        %v1394 = vpop.f32.mrb[0].mxu0
        %v1395 = vadd.f32 0.0, %v1394
        %v1396 = vpop.f32.mrb[0].mxu0
        %v1397 = vadd.f32 0.0, %v1396
        %v1398 = vpop.f32.mrb[0].mxu0
        %v1399 = vpop.f32.mrb[0].mxu0
        %1400 = vdwg.mxu0
        %v1401 = vadd.f32 %v1339, %v1395
        %v1402 = vadd.f32 %v1340, %v1397
        %1403 = vrot.lane.b32.xlu0 %v917, 111
        %v1404 = vpop.permute.xlu0 %1403
        %1405 = vrot.lane.b32.xlu0 %v918, 111
        %v1406 = vpop.permute.xlu0 %1405
        %v1407 = vsel %vm824, %v1404, %v1406
        %v1408 = vsel %vm824, %v1406, %v1404
        %v1409 = vmul.f32 %v1407, %v833
        %v1410 = vmul.f32 %v1408, %v837
        %v1411 = vpack.c.bf16 %v1409, %v1409
        %v1412 = vpack.c.bf16 %v1410, %v1410
        %v1414 = vsel %vm284, %v230, 0
        %v1417 = vsel %vm288, %v1411, 0
        %v1420 = vsel %vm288, %v1412, 0
        %1422 = vmatprep.subr.bf16.mxu0 %v1420
        %1423 = vmatpush1.bf16.msra.mxu0 %v1417
        %1424 = vmatprep.subr.bf16.mxu0 0
        %1425 = vmatpush1.bf16.msra.mxu0 0
        %1426 = vmatprep.subr.bf16.mxu0 0
        %1427 = vmatpush1.bf16.msra.mxu0 0
        %1428 = vmatprep.subr.bf16.mxu0 0
        %1429 = vmatpush1.bf16.msra.mxu0 0
        %1430 = vmatprep.subr.bf16.mxu0 0
        %1431 = vmatpush1.bf16.msra.mxu0 0
        %1432 = vmatprep.subr.bf16.mxu0 0
        %1433 = vmatpush1.bf16.msra.mxu0 0
        %1434 = vmatprep.subr.bf16.mxu0 0
        %1435 = vmatpush1.bf16.msra.mxu0 0
        %1436 = vmatprep.subr.bf16.mxu0 0
        %1437 = vmatpush1.bf16.msra.mxu0 0
        %1438 = vmatprep.subr.bf16.mxu0 0
        %1439 = vmatpush1.bf16.msra.mxu0 0
        %1440 = vmatprep.subr.bf16.mxu0 0
        %1441 = vmatpush1.bf16.msra.mxu0 0
        %1442 = vmatprep.subr.bf16.mxu0 0
        %1443 = vmatpush1.bf16.msra.mxu0 0
        %1444 = vmatprep.subr.bf16.mxu0 0
        %1445 = vmatpush1.bf16.msra.mxu0 0
        %1446 = vmatprep.subr.bf16.mxu0 0
        %1447 = vmatpush1.bf16.msra.mxu0 0
        %1448 = vmatprep.subr.bf16.mxu0 0
        %1449 = vmatpush1.bf16.msra.mxu0 0
        %1450 = vmatprep.subr.bf16.mxu0 0
        %1451 = vmatpush1.bf16.msra.mxu0 0
        %1452 = vmatprep.subr.bf16.mxu0 0
        %1453 = vmatpush1.bf16.msra.mxu0 0
        %1454 = vmatprep.mubr.bf16.mxu0 0
        %1455 = vmatmul.mubr.bf16.gmra.mrb[0].mxu0 %v1414
        %v1456 = vpop.f32.mrb[0].mxu0
        %v1457 = vadd.f32 0.0, %v1456
        %v1458 = vpop.f32.mrb[0].mxu0
        %v1459 = vadd.f32 0.0, %v1458
        %v1460 = vpop.f32.mrb[0].mxu0
        %v1461 = vpop.f32.mrb[0].mxu0
        %1462 = vdwg.mxu0
        %v1463 = vadd.f32 %v1401, %v1457
        %v1464 = vadd.f32 %v1402, %v1459
        %v1465 = vsel %vm896, %v1463, 0.0
        %v1466 = vsel %vm896, %v1464, 0.0
        %v1467 = vadd.f32 %v1465, %v1466
        %1468 = vadd.xlane.f32.xlu0 %v1467
        %v1469 = vpop.xlane.xlu0 %1468
        %v1470 = vmul.f32 %v1469, 0.00390625
        %v1471 = vsub.f32 %v1463, %v1470
        %v1472 = vsub.f32 %v1464, %v1470
        %v1473 = vmul.f32 %v1471, %v1471
        %v1474 = vmul.f32 %v1472, %v1472
        %v1475 = vsel %vm896, %v1473, 0.0
        %v1476 = vsel %vm896, %v1474, 0.0
        %v1477 = vadd.f32 %v1475, %v1476
        %1478 = vadd.xlane.f32.xlu0 %v1477
        %v1479 = vpop.xlane.xlu0 %1478
        %v1480 = vmul.f32 %v1479, 0.00390625
        %v1481 = vadd.f32 %v1480, 1e-05
        %v1482 = vrsqrt.pop %v1481
        %v1483 = vmul.f32 %v1471, %v1482
        %v1484 = vmul.f32 %v1472, %v1482
        %v1485 = vadd.f32 %v1483, %v231
        %v1486 = vadd.f32 %v1484, %v233
        %v1489 = vcombine.low %v1485, %v1486
        %1491 = vst [vmem:[%s190] sm:$0xff] %v1489
        %s1492 = sand.u32 %s115, 1
        %s1493 = scalar_lea.sflag [#allocation3], %s1492
        %s1494 = sand.u32 %s115, 1
        %s1495 = smul.addr %s1494, 8
        %s1496 = scalar_lea.vmem [#allocation2], %s1495
        // Predicated region
        $region37: #{tpu_custom_call.1} parent=35 // pred_check
          %p1497 = pneg %p125
        $region38: #{tpu_custom_call.1} parent=35 // pred_check_branch
          %1499 = sbr.rel (%p1497) target = $region40
        $region39: #{tpu_custom_call.1} parent=35 // pred_region
          %s1501 = ssub.s32 128, 128
          %1502 = vsyncadd %s1493, %s1501
          %s1503 = smul.addr %s18, 2
          %s1504 = smul.addr %s1503, 64
          %s1505 = scalar_lea.hbm %s4, %s1504
          %s1507 = sshll.u32 %s1496, 4
          %s1508 = int_to_ptr.vmem [resolvable:$true] %s1507
          %1510 = dma.vmem_to_hbm [thread:$0]  %s1508, 128, %s1505, %s1493
        $region40: #{tpu_custom_call.1} parent=35 // pred_fallthru
          _
      $region36: #{tpu_custom_call.1} parent=5 // pred_fallthru
        _
      %p1511 = scmp.le.s32.totalorder 2, %s13
      // Predicated region
      $region41: #{tpu_custom_call.1} parent=5 // pred_check
        %p1512 = pneg %p1511
      $region42: #{tpu_custom_call.1} parent=5 // pred_check_branch
        %1514 = sbr.rel (%p1512) target = $region44
      $region43: #{tpu_custom_call.1} parent=5 // pred_region
        %s1515 = ssub.s32 %s13, 2
        // Predicated region
        $region45: #{tpu_custom_call.1} parent=43 // pred_check
          %p1516 = pneg %p131
        $region46: #{tpu_custom_call.1} parent=43 // pred_check_branch
          %1518 = sbr.rel (%p1516) target = $region48
        $region47: #{tpu_custom_call.1} parent=43 // pred_region
          %s1519 = sand.u32 %s116, 1
          %s1520 = scalar_lea.sflag [#allocation3], %s1519
          %s1521 = sand.u32 %s116, 1
          %s1522 = smul.addr %s1521, 8
          %s1523 = scalar_lea.vmem [#allocation2], %s1522
          %1524 = dma.done %s1520, 128
        $region48: #{tpu_custom_call.1} parent=43 // pred_fallthru
          _
      $region44: #{tpu_custom_call.1} parent=5 // pred_fallthru
        _
    $region6: #{tpu_custom_call.1} parent=1 // loop_footer
      %s17 = sadd.s32 1, %s13
    $region7: #{tpu_custom_call.1} parent=1 // loop_footer_branch
      %12 = sbr.rel target = $region3
    $region8: #{tpu_custom_call.1} parent=1 // loop_exit
      _
    %1525 = vsyncpa [#allocation3], 1
    %s1526 = scalar_lea.sflag [#allocation3], 1
    %1527 = vsyncpa %s1526, 1

</llo_original>
